<compile_context>
chip_gen: v7x
topology: tpu7x:2x2x1
jax: 0.10.0
libtpu: 0.0.40
codegen_flags: <defaults>
</compile_context>

<pallas_src>
import numpy as np
import jax
import jax.numpy as jnp
from jax.experimental import pallas as pl
from jax.experimental.pallas import tpu as pltpu


# ----------------------------- Pallas kernel -------------------------------

def cluster_gcn_kernel(kidx_ref, kc_ref, a_ref, xw_ref, xt_ref, b_ref, m_ref,
                       o_ref):
    # kidx_ref: (n_row * max_kc,) SMEM  clamped K-block index table (used by index_maps)
    # kc_ref  : (n_row,)          SMEM  number of active K blocks per row tile
    # a_ref   : (tm, tk)  bf16  tile of normalized block-diagonal adjacency
    # xw_ref  : (tk, Fp)  bf16  tile of the hoisted feature transform X @ W.T
    # xt_ref  : (tm, Fp)  f32   original features (pass-through path)
    # b_ref   : (1,  Fp)  f32   bias (zero-padded)
    # m_ref   : (tm, 1)   f32   processed-node mask (1 -> GCN output, 0 -> X)
    # o_ref   : (tm, Fp)  f32   output block, resident across the K axis (accumulator)
    i = pl.program_id(0)
    k = pl.program_id(1)

    @pl.when(k == 0)
    def _init():
        o_ref[...] = jnp.zeros_like(o_ref)

    # Only accumulate inside this row tile's own cluster K range; steps beyond it
    # see a clamped (repeated) block index, so there is no extra DMA either.
    @pl.when(k < kc_ref[i])
    def _accumulate():
        o_ref[...] += jnp.dot(a_ref[...], xw_ref[...],
                              preferred_element_type=jnp.float32)

    @pl.when(k == pl.num_programs(1) - 1)
    def _finalize():
        agg = o_ref[...] + b_ref[...]
        o_ref[...] = jnp.where(m_ref[...] > 0.0, agg,
                               xt_ref[...]).astype(o_ref.dtype)


def _pick_tile(n, cap=512):
    """Largest divisor of n that is <= cap, preferring 256-aligned, then 128."""
    for align in (256, 128):
        cands = [d for d in range(align, min(n, cap) + 1, align) if n % d == 0]
        if cands:
            return max(cands)
    return n


def cluster_gcn_forward(a_hat, x, w, b, processed, cluster, *, tm=None, tk=None):
    """a_hat: (N,N) normalized adjacency, x: (N,Fin), w: (Fout,Fin), b: (Fout,),
    processed: (N,) {0,1}, cluster: (N,) int cluster ids (all in original order)."""
    N, f_in = x.shape
    f_out, f_in_w = w.shape
    assert f_in_w == f_in
    # Pass-through (skipped clusters keep original features) requires equal dims.
    assert f_out == f_in, "ClusterGCNLayer in-place writeback requires F_OUT == F_IN"
    assert N % 128 == 0, "node count must be a multiple of 128 (pad upstream)"

    tm = _pick_tile(N) if tm is None else tm
    tk = _pick_tile(N) if tk is None else tk
    assert N % tm == 0 and N % tk == 0
    assert tm % 16 == 0                         # bf16 sublane packing of A rows
    assert tk % 128 == 0                        # lane-dense A tiles / XW sublanes

    # Lane-dense padded feature width (multiple of 128).
    fp = max(128, pl.cdiv(max(f_in, f_out), 128) * 128)

    # ---- reorder nodes so every cluster is contiguous (block-diagonal A) ----
    cluster_np = np.asarray(cluster)
    perm = np.argsort(cluster_np, kind="stable")
    inv_perm = np.argsort(perm)
    c_sorted = cluster_np[perm]

    x_np = np.asarray(x, np.float32)
    a_np = np.asarray(a_hat, np.float32)
    p_np = np.asarray(processed, np.float32)

    x_perm = x_np[perm]
    a_perm = a_np[perm][:, perm]
    p_perm = p_np[perm]

    # Per-node [start, end) of its cluster's node range in permuted order.
    node_lo = np.searchsorted(c_sorted, c_sorted, side="left")
    node_hi = np.searchsorted(c_sorted, c_sorted, side="right")

    n_row = N // tm
    r0 = np.arange(n_row) * tm
    r1 = r0 + tm - 1
    ks = node_lo[r0] // tk                       # first K block per row tile
    ke = -(-node_hi[r1] // tk)                   # one-past-last K block
    kc = (ke - ks).astype(np.int32)              # active K blocks per row tile
    max_kc = int(kc.max())

    # Clamped K-block index table: for k >= kc[i] repeat the last active block
    # (same block index => the pipeline skips the DMA; pl.when skips the FLOPs).
    kk = np.arange(max_kc)[None, :]
    kidx = (ks[:, None] + np.minimum(kk, (kc - 1)[:, None])).astype(np.int32)
    kidx_flat = jnp.asarray(kidx.reshape(-1), jnp.int32)
    kc_dev = jnp.asarray(kc, jnp.int32)

    # ---- device operands (permuted order, zero-padded to fp lanes) ----------
    x_dev = jnp.asarray(x_perm)
    wt_pad = jnp.zeros((f_in, fp), jnp.float32).at[:, :f_out].set(
        jnp.asarray(w, jnp.float32).T)
    # Hoisted feature transform, computed ONCE in f32, bf16 for the aggregation.
    xw = jnp.dot(x_dev, wt_pad,
                 preferred_element_type=jnp.float32).astype(jnp.bfloat16)

    x_pad = jnp.zeros((N, fp), jnp.float32).at[:, :f_in].set(x_dev)
    b_pad = jnp.zeros((1, fp), jnp.float32).at[0, :f_out].set(
        jnp.asarray(b, jnp.float32))
    m2 = jnp.asarray(p_perm).reshape(N, 1)
    a_bf16 = jnp.asarray(a_perm).astype(jnp.bfloat16)

    grid = (n_row, max_kc)   # rows "parallel" (megacore), K reduction last, "arbitrary"

    # Double-buffered VMEM footprint (+ headroom) instead of a blanket limit.
    buf_bytes = 2 * (tm * tk * 2      # A tile (bf16)
                     + tk * fp * 2    # XW tile (bf16)
                     + tm * fp * 4    # X pass-through tile (f32)
                     + tm * fp * 4    # output tile (f32)
                     + tm * 128 * 4   # mask tile (lane-padded f32)
                     + 8 * 128 * 4)   # bias tile (padded)
    vmem_limit = int(min(64 * 1024 * 1024, max(2 * buf_bytes + (2 << 20), 8 << 20)))

    sum_kc = int(kc.sum())
    cost = pl.CostEstimate(
        flops=2 * tm * tk * fp * sum_kc,
        transcendentals=0,
        bytes_accessed=int(sum_kc * (tm * tk * 2 + tk * fp * 2)   # A + XW blocks actually streamed
                           + N * fp * 4 + N * fp * 4               # xt + out
                           + N * 128 * 4 + 8 * 128 * 4),           # mask + bias
    )

    out = pl.pallas_call(
        cluster_gcn_kernel,
        out_shape=jax.ShapeDtypeStruct((N, fp), jnp.float32),
        grid_spec=pltpu.PrefetchScalarGridSpec(
            num_scalar_prefetch=2,
            grid=grid,
            in_specs=[
                # A tile: row block i, data-dependent K block from the prefetch table.
                pl.BlockSpec((tm, tk),
                             lambda i, k, kidx_r, kc_r: (i, kidx_r[i * max_kc + k])),
                # XW tile: same data-dependent K block (only in-cluster blocks streamed).
                pl.BlockSpec((tk, fp),
                             lambda i, k, kidx_r, kc_r: (kidx_r[i * max_kc + k], 0)),
                # X pass-through tile (constant over k -> fetched once per row tile).
                pl.BlockSpec((tm, fp), lambda i, k, kidx_r, kc_r: (i, 0)),
                # bias (grid-invariant).
                pl.BlockSpec((1, fp), lambda i, k, kidx_r, kc_r: (0, 0)),
                # processed-node mask.
                pl.BlockSpec((tm, 1), lambda i, k, kidx_r, kc_r: (i, 0)),
            ],
            out_specs=pl.BlockSpec((tm, fp), lambda i, k, kidx_r, kc_r: (i, 0)),
        ),
        compiler_params=pltpu.CompilerParams(
            dimension_semantics=("parallel", "arbitrary"),
            vmem_limit_bytes=vmem_limit,
        ),
        cost_estimate=cost,
    )(kidx_flat, kc_dev, a_bf16, xw, x_pad, b_pad, m2)

    # Un-permute rows back to the original node order, drop lane padding.
    out = out[jnp.asarray(inv_perm)]
    return out[:, :f_out]


# ------------------------- graph preprocessing glue -------------------------

def build_normalized_adjacency(edge_index, cluster, n_nodes):
    """Dense cluster-masked normalized adjacency + processed-node mask (numpy)."""
    src = np.asarray(edge_index[0])
    dst = np.asarray(edge_index[1])
    c = np.asarray(cluster)

    intra = c[src] == c[dst]
    src_i, dst_i = src[intra], dst[intra]

    A = np.zeros((n_nodes, n_nodes), np.float32)
    np.add.at(A, (dst_i, src_i), 1.0)          # A[i, j] = # edges j -> i
    A_hat = A + np.eye(n_nodes, dtype=np.float32)
    deg = A_hat.sum(axis=1)
    dinv = 1.0 / np.sqrt(deg)
    A_norm = dinv[:, None] * A_hat * dinv[None, :]

    clusters_with_edges = set(np.unique(c[src_i]).tolist())
    processed = np.array([cc in clusters_with_edges for cc in c], dtype=np.float32)
    return A_norm, processed


# ------------------------- numpy reference (torch loop) ---------------------

def reference_forward(X, W, b, cluster, edge_index):
    X_updated = X.copy()
    src, dst = np.asarray(edge_index[0]), np.asarray(edge_index[1])
    for cval in np.unique(cluster):
        mask = cluster == cval
        node_idx = np.where(mask)[0]
        if node_idx.size == 0:
            continue
        emask = mask[src] & mask[dst]
        if emask.sum() == 0:
            continue
        sub_src, sub_dst = src[emask], dst[emask]
        g2l = {int(g): l for l, g in enumerate(node_idx)}
        ls = np.array([g2l[int(s)] for s in sub_src])
        ld = np.array([g2l[int(d)] for d in sub_dst])
        n = node_idx.size
        A = np.zeros((n, n), np.float32)
        np.add.at(A, (ld, ls), 1.0)
        A_hat = A + np.eye(n, dtype=np.float32)
        deg = A_hat.sum(1)
        dinv = deg ** -0.5
        A_norm = dinv[:, None] * A_hat * dinv[None, :]
        Xc = X[node_idx]
        X_updated[node_idx] = A_norm @ (Xc @ W.T) + b
    return X_updated


# ----------------------------------- main -----------------------------------

if __name__ == "__main__":
    N_NODES = 512         # stand-in for n_users + n_movies
    F_IN = 32             # in_channels
    F_OUT = 32            # out_channels (== F_IN for in-place writeback)
    N_EDGES = 2048

    key = jax.random.PRNGKey(0)
    k_x, k_w, k_b, k_e, k_p = jax.random.split(key, 5)

    # np.array(...) makes writable copies (np.asarray of a JAX array is read-only).
    X = np.array(jax.random.normal(k_x, (N_NODES, F_IN), jnp.float32))
    W = np.array(jax.random.normal(k_w, (F_OUT, F_IN), jnp.float32)) * 0.1
    b = np.array(jax.random.normal(k_b, (F_OUT,), jnp.float32)) * 0.1

    edges = np.array(jax.random.randint(k_e, (2, N_EDGES), 0, N_NODES))
    self_loop = edges[0] == edges[1]
    edges[1, self_loop] = (edges[1, self_loop] + 1) % N_NODES   # no raw self loops

    # Imbalanced cluster sizes so different row tiles get different K ranges
    # (exercises the scalar-prefetch gating); the last 3-node cluster is made
    # edge-free to exercise the "skip cluster, keep original features" branch.
    sizes = [200, 120, 80, 60, 49, 3]
    assert sum(sizes) == N_NODES
    ids_sorted = np.repeat(np.arange(len(sizes)), sizes)
    shuffle = np.array(jax.random.permutation(k_p, N_NODES))
    cluster = np.empty(N_NODES, np.int64)
    cluster[shuffle] = ids_sorted                # shuffled (non-contiguous) assignment

    empty_nodes = np.where(cluster == len(sizes) - 1)[0]
    drop = np.isin(edges[0], empty_nodes) & np.isin(edges[1], empty_nodes)
    edges = edges[:, ~drop]

    A_norm, processed = build_normalized_adjacency(edges, cluster, N_NODES)
    ref = reference_forward(X, W, b, cluster, edges)

    # Config 1: auto tiles (largest 256-aligned divisor of N up to 512).
    out1 = jax.block_until_ready(
        cluster_gcn_forward(A_norm, X, W, b, processed, cluster))
    out1_np = np.array(out1)
    # bf16 adjacency / XW inputs with f32 accumulation -> loosened tolerance.
    np.testing.assert_allclose(out1_np, ref, rtol=5e-2, atol=5e-2)

    # Config 2: explicit small tiles -> multi-tile grid, exercises the
    # data-dependent K-block index table, gated K steps and row-unpermute.
    out2 = jax.block_until_ready(
        cluster_gcn_forward(A_norm, X, W, b, processed, cluster, tm=128, tk=128))
    out2_np = np.array(out2)
    np.testing.assert_allclose(out2_np, ref, rtol=5e-2, atol=5e-2)

    # Skipped-cluster nodes pass through in f32 exactly.
    assert np.allclose(out1_np[empty_nodes], X[empty_nodes], rtol=1e-6, atol=1e-6)
    assert np.allclose(out2_np[empty_nodes], X[empty_nodes], rtol=1e-6, atol=1e-6)

    print("KERNEL_OK")
</pallas_src>

<mosaic_0001>
module attributes {stable_mosaic.version = 11 : i64} {
  func.func @cluster_gcn_kernel(%arg0: i32, %arg1: i32, %arg2: memref<1xi32, #tpu.memory_space<smem>>, %arg3: memref<1xi32, #tpu.memory_space<smem>>, %arg4: memref<512x512xbf16, #tpu.memory_space<vmem>>, %arg5: memref<512x128xbf16, #tpu.memory_space<vmem>>, %arg6: memref<512x128xf32, #tpu.memory_space<vmem>>, %arg7: memref<1x128xf32, #tpu.memory_space<vmem>>, %arg8: memref<512x1xf32, #tpu.memory_space<vmem>>, %arg9: memref<512x128xf32, #tpu.memory_space<vmem>>) attributes {dimension_semantics = [#tpu.dimension_semantics<parallel>, #tpu.dimension_semantics<arbitrary>], iteration_bounds = array<i64: 1, 1>, scalar_prefetch = 2 : i64, scratch_operands = 0 : i64, tpu.core_type = #tpu.core_type<tc>, window_params = [{transform_indices = @transform_0, window_bounds = array<i64: 512, 512>}, {transform_indices = @transform_1, window_bounds = array<i64: 512, 128>}, {transform_indices = @transform_2, window_bounds = array<i64: 512, 128>}, {pipeline_mode = #tpu.pipeline_mode<synchronous>, transform_indices = @transform_3, window_bounds = array<i64: 1, 128>}, {transform_indices = @transform_4, window_bounds = array<i64: 512, 1>}, {transform_indices = @transform_5, window_bounds = array<i64: 512, 128>}]} {
    %c0_i32 = arith.constant 0 : i32
    %0 = arith.cmpi eq, %arg1, %c0_i32 : i32
    %1 = arith.extui %0 : i1 to i32
    %c0_i32_0 = arith.constant 0 : i32
    %2 = arith.cmpi ne, %1, %c0_i32_0 : i32
    scf.if %2 {
      %cst = arith.constant 0.000000e+00 : f32
      %11 = vector.broadcast %cst : f32 to vector<512x128xf32>
      %c0 = arith.constant 0 : index
      %c0_4 = arith.constant 0 : index
      %12 = vector.load %arg9[%c0, %c0_4] : memref<512x128xf32, #tpu.memory_space<vmem>>, vector<512x128xf32>
      tpu.vector_store %arg9[%c0, %c0_4], %11 {strides = array<i32>} : memref<512x128xf32, #tpu.memory_space<vmem>>, vector<512x128xf32>,
    } else {
    }
    %3 = arith.index_cast %arg0 : i32 to index
    %4 = memref.load %arg3[%3] : memref<1xi32, #tpu.memory_space<smem>>
    %5 = arith.cmpi slt, %arg1, %4 : i32
    %6 = arith.extui %5 : i1 to i32
    %c0_i32_1 = arith.constant 0 : i32
    %7 = arith.cmpi ne, %6, %c0_i32_1 : i32
    scf.if %7 {
      %c0 = arith.constant 0 : index
      %c0_4 = arith.constant 0 : index
      %11 = vector.load %arg9[%c0, %c0_4] : memref<512x128xf32, #tpu.memory_space<vmem>>, vector<512x128xf32>
      %c0_5 = arith.constant 0 : index
      %c0_6 = arith.constant 0 : index
      %12 = vector.load %arg4[%c0_5, %c0_6] : memref<512x512xbf16, #tpu.memory_space<vmem>>, vector<512x512xbf16>
      %c0_7 = arith.constant 0 : index
      %c0_8 = arith.constant 0 : index
      %13 = vector.load %arg5[%c0_7, %c0_8] : memref<512x128xbf16, #tpu.memory_space<vmem>>, vector<512x128xbf16>
      %cst = arith.constant dense<0.000000e+00> : vector<512x128xf32>
      %14 = tpu.matmul %12, %13, %cst {dimension_numbers = #tpu.dot_dimension_numbers<[1], [0], [0], [1], [0, 0, 1, 1], [], []>} : vector<512x512xbf16>, vector<512x128xbf16>, vector<512x128xf32> -> vector<512x128xf32>
      %15 = arith.addf %11, %14 : vector<512x128xf32>
      %c0_9 = arith.constant 0 : index
      %c0_10 = arith.constant 0 : index
      %16 = vector.load %arg9[%c0_9, %c0_10] : memref<512x128xf32, #tpu.memory_space<vmem>>, vector<512x128xf32>
      tpu.vector_store %arg9[%c0_9, %c0_10], %15 {strides = array<i32>} : memref<512x128xf32, #tpu.memory_space<vmem>>, vector<512x128xf32>,
    } else {
    }
    %c0_i32_2 = arith.constant 0 : i32
    %8 = arith.cmpi eq, %arg1, %c0_i32_2 : i32
    %9 = arith.extui %8 : i1 to i32
    %c0_i32_3 = arith.constant 0 : i32
    %10 = arith.cmpi ne, %9, %c0_i32_3 : i32
    scf.if %10 {
      %c0 = arith.constant 0 : index
      %c0_4 = arith.constant 0 : index
      %11 = vector.load %arg9[%c0, %c0_4] : memref<512x128xf32, #tpu.memory_space<vmem>>, vector<512x128xf32>
      %c0_5 = arith.constant 0 : index
      %c0_6 = arith.constant 0 : index
      %12 = vector.load %arg7[%c0_5, %c0_6] : memref<1x128xf32, #tpu.memory_space<vmem>>, vector<1x128xf32>
      %13 = vector.broadcast %12 : vector<1x128xf32> to vector<512x128xf32>
      %14 = arith.addf %11, %13 : vector<512x128xf32>
      %c0_7 = arith.constant 0 : index
      %c0_8 = arith.constant 0 : index
      %15 = vector.load %arg8[%c0_7, %c0_8] : memref<512x1xf32, #tpu.memory_space<vmem>>, vector<512x1xf32>
      %cst = arith.constant 0.000000e+00 : f32
      %16 = vector.broadcast %cst : f32 to vector<512x1xf32>
      %17 = arith.cmpf ogt, %15, %16 : vector<512x1xf32>
      %c0_9 = arith.constant 0 : index
      %c0_10 = arith.constant 0 : index
      %18 = vector.load %arg6[%c0_9, %c0_10] : memref<512x128xf32, #tpu.memory_space<vmem>>, vector<512x128xf32>
      %19 = vector.shape_cast %17 : vector<512x1xi1> to vector<512x1xi1>
      %20 = vector.broadcast %19 : vector<512x1xi1> to vector<512x128xi1>
      %21 = arith.select %20, %14, %18 : vector<512x128xi1>, vector<512x128xf32>
      %c0_11 = arith.constant 0 : index
      %c0_12 = arith.constant 0 : index
      %22 = vector.load %arg9[%c0_11, %c0_12] : memref<512x128xf32, #tpu.memory_space<vmem>>, vector<512x128xf32>
      tpu.vector_store %arg9[%c0_11, %c0_12], %21 {strides = array<i32>} : memref<512x128xf32, #tpu.memory_space<vmem>>, vector<512x128xf32>,
    } else {
    }
    return
  }
  func.func @transform_0(%arg0: i32, %arg1: i32, %arg2: memref<1xi32, #tpu.memory_space<smem>>, %arg3: memref<1xi32, #tpu.memory_space<smem>>) -> (i32, i32) {
    %c1_i32 = arith.constant 1 : i32
    %0 = arith.muli %arg0, %c1_i32 : i32
    %1 = arith.addi %0, %arg1 : i32
    %2 = arith.index_cast %1 : i32 to index
    %3 = memref.load %arg2[%2] : memref<1xi32, #tpu.memory_space<smem>>
    %c0_i32 = arith.constant 0 : i32
    return %arg0, %3 : i32, i32
  }
  func.func @transform_1(%arg0: i32, %arg1: i32, %arg2: memref<1xi32, #tpu.memory_space<smem>>, %arg3: memref<1xi32, #tpu.memory_space<smem>>) -> (i32, i32) {
    %c1_i32 = arith.constant 1 : i32
    %0 = arith.muli %arg0, %c1_i32 : i32
    %1 = arith.addi %0, %arg1 : i32
    %2 = arith.index_cast %1 : i32 to index
    %3 = memref.load %arg2[%2] : memref<1xi32, #tpu.memory_space<smem>>
    %c0_i32 = arith.constant 0 : i32
    %c0_i32_0 = arith.constant 0 : i32
    return %3, %c0_i32 : i32, i32
  }
  func.func @transform_2(%arg0: i32, %arg1: i32, %arg2: memref<1xi32, #tpu.memory_space<smem>>, %arg3: memref<1xi32, #tpu.memory_space<smem>>) -> (i32, i32) {
    %c0_i32 = arith.constant 0 : i32
    %c0_i32_0 = arith.constant 0 : i32
    return %arg0, %c0_i32 : i32, i32
  }
  func.func @transform_3(%arg0: i32, %arg1: i32, %arg2: memref<1xi32, #tpu.memory_space<smem>>, %arg3: memref<1xi32, #tpu.memory_space<smem>>) -> (i32, i32) {
    %c0_i32 = arith.constant 0 : i32
    %c0_i32_0 = arith.constant 0 : i32
    %c0_i32_1 = arith.constant 0 : i32
    return %c0_i32, %c0_i32_0 : i32, i32
  }
  func.func @transform_4(%arg0: i32, %arg1: i32, %arg2: memref<1xi32, #tpu.memory_space<smem>>, %arg3: memref<1xi32, #tpu.memory_space<smem>>) -> (i32, i32) {
    %c0_i32 = arith.constant 0 : i32
    %c0_i32_0 = arith.constant 0 : i32
    return %arg0, %c0_i32 : i32, i32
  }
  func.func @transform_5(%arg0: i32, %arg1: i32, %arg2: memref<1xi32, #tpu.memory_space<smem>>, %arg3: memref<1xi32, #tpu.memory_space<smem>>) -> (i32, i32) {
    %c0_i32 = arith.constant 0 : i32
    %c0_i32_0 = arith.constant 0 : i32
    return %arg0, %c0_i32 : i32, i32
  }
}

</mosaic_0001>

<llo_original>
// kernel: tpu_custom_call.1
$region0: #{tpu_custom_call.1}
  #allocation0 [shape = 'u32[]', space=smem, size = 0x4, offset = 0x4, fixed_abs, tag = 'smem constant byte address 0x4 - core index']
  #allocation1 [shape = 'u32[144,128]{1,0:T(1,128)}', space=vmem, size = 0x12000, scoped, tag = 'internal scratch']
  #allocation2 [shape = 's32[1]{0}', space=sflag, size = 0x4, scoped, tag = 'scoped memory for tpu_custom_call.1']
  #allocation3 [shape = 's32[1]{0:T(128)S(6)}', space=smem, size = 0x200, scoped, tag = 'prefetched SMEM operand 0']
  #allocation4 [shape = 's32[1]{0:T(128)S(6)}', space=smem, size = 0x200, scoped, tag = 'prefetched SMEM operand 1']
  %s0 = inlined_call_operand.<no memory space> [shape: s32[1], index: 0, kind: input, shape index: {}]
  %s1 = inlined_call_operand.<no memory space> [shape: s32[1], index: 1, kind: input, shape index: {}]
  %s2 = inlined_call_operand.hbm [shape: bf16[512,512], index: 2, kind: input, shape index: {}]
  %s3 = inlined_call_operand.hbm [shape: bf16[512,128], index: 3, kind: input, shape index: {}]
  %s4 = inlined_call_operand.vmem [shape: f32[512,128], index: 4, kind: input, shape index: {}]
  %s5 = inlined_call_operand.vmem [shape: f32[1,128], index: 5, kind: input, shape index: {}]
  %s6 = inlined_call_operand.vmem [shape: f32[512,1], index: 6, kind: input, shape index: {}]
  %s7 = inlined_call_operand.hbm [shape: f32[512,128], index: 7, kind: output, shape index: {}]
  %s8 = sld [smem:[#allocation0]]
  $region50: #{tpu_custom_call.1} parent=0
    _
  %s10 = ssub.s32 1, %s8
  %s11 = scalar_select 0, %s10, %s8
  %12 = sst [smem:[#allocation3]] %s0
  %13 = sst [smem:[#allocation4]] %s1
  $region1: #{tpu_custom_call.1} parent=0
    #allocation5 [shape = 'u8[524288]{0}', space=vmem, size = 0x80000, scoped, tag = 'input window, operand 2, single buffered']
    #allocation6 [shape = 's32[1]{0}', space=sflag, size = 0x4, scoped, tag = 'scoped memory for tpu_custom_call.1']
    #allocation7 [shape = 's32[1]{0}', space=sflag, size = 0x4, scoped, tag = 'scoped memory for tpu_custom_call.1']
    #allocation8 [shape = 'u8[131072]{0}', space=vmem, size = 0x20000, scoped, tag = 'input window, operand 3, single buffered']
    #allocation9 [shape = 's32[1]{0}', space=sflag, size = 0x4, scoped, tag = 'scoped memory for tpu_custom_call.1']
    #allocation10 [shape = 'u8[262144]{0}', space=vmem, size = 0x40000, scoped, tag = 'output window, operand 0, single buffered']
    %14 = vsyncpa [#allocation6], 0
    %15 = vsyncpa [#allocation9], 0
    %16 = vsyncpa [#allocation7], 0
    // Predicated region
    $region2: #{tpu_custom_call.1} parent=1 // pred_check
      _
    $region3: #{tpu_custom_call.1} parent=1 // pred_check_branch
      %18 = sbr.rel (0) target = $region5
    $region4: #{tpu_custom_call.1} parent=1 // pred_region
      %s19 = sadd.s32 0, 0
      %s20 = sld [smem:[#allocation3 + %s19]]
      %s21 = smul.u32 4, %s20
      %s23 = ssub.s32 16384, 16384
      %24 = vsyncadd [#allocation6], %s23
      %s25 = smul.addr %s21, 64
      %s26 = scalar_lea.hbm %s2, %s25
      %s27 = sshll.u32 [#allocation5], 4
      %s28 = int_to_ptr.vmem [resolvable:$true] %s27
      %33 = dma.hbm_to_vmem [thread:$0]  %s26, 16384, %s28, [#allocation6], 256, 256, 16
    $region5: #{tpu_custom_call.1} parent=1 // pred_fallthru
      _
    // Predicated region
    $region6: #{tpu_custom_call.1} parent=1 // pred_check
      _
    $region7: #{tpu_custom_call.1} parent=1 // pred_check_branch
      %35 = sbr.rel (0) target = $region9
    $region8: #{tpu_custom_call.1} parent=1 // pred_region
      %s36 = sadd.s32 0, 0
      %s37 = sld [smem:[#allocation3 + %s36]]
      %s38 = smul.u32 64, %s37
      %s40 = ssub.s32 4096, 4096
      %41 = vsyncadd [#allocation9], %s40
      %s42 = smul.addr %s38, 64
      %s43 = scalar_lea.hbm %s3, %s42
      %s44 = sshll.u32 [#allocation8], 4
      %s45 = int_to_ptr.vmem [resolvable:$true] %s44
      %50 = dma.hbm_to_vmem [thread:$0]  %s43, 4096, %s45, [#allocation9], 64, 64, 4
    $region9: #{tpu_custom_call.1} parent=1 // pred_fallthru
      _
    // Predicated region
    $region10: #{tpu_custom_call.1} parent=1 // pred_check
      _
    $region11: #{tpu_custom_call.1} parent=1 // pred_check_branch
      %52 = sbr.rel (0) target = $region13
    $region12: #{tpu_custom_call.1} parent=1 // pred_region
      _
    $region13: #{tpu_custom_call.1} parent=1 // pred_fallthru
      _
    // Predicated region
    $region14: #{tpu_custom_call.1} parent=1 // pred_check
      _
    $region15: #{tpu_custom_call.1} parent=1 // pred_check_branch
      %54 = sbr.rel (0) target = $region17
    $region16: #{tpu_custom_call.1} parent=1 // pred_region
      _
    $region17: #{tpu_custom_call.1} parent=1 // pred_fallthru
      _
    // Predicated region
    $region18: #{tpu_custom_call.1} parent=1 // pred_check
      _
    $region19: #{tpu_custom_call.1} parent=1 // pred_check_branch
      %56 = sbr.rel (0) target = $region21
    $region20: #{tpu_custom_call.1} parent=1 // pred_region
      _
    $region21: #{tpu_custom_call.1} parent=1 // pred_fallthru
      _
    // Predicated region
    $region22: #{tpu_custom_call.1} parent=1 // pred_check
      _
    $region23: #{tpu_custom_call.1} parent=1 // pred_check_branch
      %58 = sbr.rel (0) target = $region25
    $region24: #{tpu_custom_call.1} parent=1 // pred_region
      %59 = dma.done [#allocation6], 16384
    $region25: #{tpu_custom_call.1} parent=1 // pred_fallthru
      _
    // Predicated region
    $region26: #{tpu_custom_call.1} parent=1 // pred_check
      _
    $region27: #{tpu_custom_call.1} parent=1 // pred_check_branch
      %61 = sbr.rel (0) target = $region29
    $region28: #{tpu_custom_call.1} parent=1 // pred_region
      %62 = dma.done [#allocation9], 4096
    $region29: #{tpu_custom_call.1} parent=1 // pred_fallthru
      _
    %s63 = sadd.s32 0, 0
    %s64 = sld [smem:[#allocation3 + %s63]]
    %s65 = smul.u32 4, %s64
    %s66 = sadd.s32 0, 0
    %s67 = sld [smem:[#allocation3 + %s66]]
    %s68 = smul.u32 64, %s67
    %p70 = scmp.eq.s32.totalorder 0, 0
    // Predicated region
    $region30: #{tpu_custom_call.1} parent=1 // pred_check
      %p71 = pneg %p70
    $region31: #{tpu_custom_call.1} parent=1 // pred_check_branch
      %73 = sbr.rel (%p71) target = $region33
    $region32: #{tpu_custom_call.1} parent=1 // pred_region
      %74 = vst [vmem:[#allocation10] sm:$0xff] 0.0
      %75 = vst [vmem:[#allocation10 + $0x8] sm:$0xff] 0.0
      %76 = vst [vmem:[#allocation10 + $0x10] sm:$0xff] 0.0
      %77 = vst [vmem:[#allocation10 + $0x18] sm:$0xff] 0.0
      %78 = vst [vmem:[#allocation10 + $0x20] sm:$0xff] 0.0
      %79 = vst [vmem:[#allocation10 + $0x28] sm:$0xff] 0.0
      %80 = vst [vmem:[#allocation10 + $0x30] sm:$0xff] 0.0
      %81 = vst [vmem:[#allocation10 + $0x38] sm:$0xff] 0.0
      %82 = vst [vmem:[#allocation10 + $0x40] sm:$0xff] 0.0
      %83 = vst [vmem:[#allocation10 + $0x48] sm:$0xff] 0.0
      %84 = vst [vmem:[#allocation10 + $0x50] sm:$0xff] 0.0
      %85 = vst [vmem:[#allocation10 + $0x58] sm:$0xff] 0.0
      %86 = vst [vmem:[#allocation10 + $0x60] sm:$0xff] 0.0
      %87 = vst [vmem:[#allocation10 + $0x68] sm:$0xff] 0.0
      %88 = vst [vmem:[#allocation10 + $0x70] sm:$0xff] 0.0
      %89 = vst [vmem:[#allocation10 + $0x78] sm:$0xff] 0.0
      %90 = vst [vmem:[#allocation10 + $0x80] sm:$0xff] 0.0
      %91 = vst [vmem:[#allocation10 + $0x88] sm:$0xff] 0.0
      %92 = vst [vmem:[#allocation10 + $0x90] sm:$0xff] 0.0
      %93 = vst [vmem:[#allocation10 + $0x98] sm:$0xff] 0.0
      %94 = vst [vmem:[#allocation10 + $0xa0] sm:$0xff] 0.0
      %95 = vst [vmem:[#allocation10 + $0xa8] sm:$0xff] 0.0
      %96 = vst [vmem:[#allocation10 + $0xb0] sm:$0xff] 0.0
      %97 = vst [vmem:[#allocation10 + $0xb8] sm:$0xff] 0.0
      %98 = vst [vmem:[#allocation10 + $0xc0] sm:$0xff] 0.0
      %99 = vst [vmem:[#allocation10 + $0xc8] sm:$0xff] 0.0
      %100 = vst [vmem:[#allocation10 + $0xd0] sm:$0xff] 0.0
      %101 = vst [vmem:[#allocation10 + $0xd8] sm:$0xff] 0.0
      %102 = vst [vmem:[#allocation10 + $0xe0] sm:$0xff] 0.0
      %103 = vst [vmem:[#allocation10 + $0xe8] sm:$0xff] 0.0
      %104 = vst [vmem:[#allocation10 + $0xf0] sm:$0xff] 0.0
      %105 = vst [vmem:[#allocation10 + $0xf8] sm:$0xff] 0.0
      %106 = vst [vmem:[#allocation10 + $0x100] sm:$0xff] 0.0
      %107 = vst [vmem:[#allocation10 + $0x108] sm:$0xff] 0.0
      %108 = vst [vmem:[#allocation10 + $0x110] sm:$0xff] 0.0
      %109 = vst [vmem:[#allocation10 + $0x118] sm:$0xff] 0.0
      %110 = vst [vmem:[#allocation10 + $0x120] sm:$0xff] 0.0
      %111 = vst [vmem:[#allocation10 + $0x128] sm:$0xff] 0.0
      %112 = vst [vmem:[#allocation10 + $0x130] sm:$0xff] 0.0
      %113 = vst [vmem:[#allocation10 + $0x138] sm:$0xff] 0.0
      %114 = vst [vmem:[#allocation10 + $0x140] sm:$0xff] 0.0
      %115 = vst [vmem:[#allocation10 + $0x148] sm:$0xff] 0.0
      %116 = vst [vmem:[#allocation10 + $0x150] sm:$0xff] 0.0
      %117 = vst [vmem:[#allocation10 + $0x158] sm:$0xff] 0.0
      %118 = vst [vmem:[#allocation10 + $0x160] sm:$0xff] 0.0
      %119 = vst [vmem:[#allocation10 + $0x168] sm:$0xff] 0.0
      %120 = vst [vmem:[#allocation10 + $0x170] sm:$0xff] 0.0
      %121 = vst [vmem:[#allocation10 + $0x178] sm:$0xff] 0.0
      %122 = vst [vmem:[#allocation10 + $0x180] sm:$0xff] 0.0
      %123 = vst [vmem:[#allocation10 + $0x188] sm:$0xff] 0.0
      %124 = vst [vmem:[#allocation10 + $0x190] sm:$0xff] 0.0
      %125 = vst [vmem:[#allocation10 + $0x198] sm:$0xff] 0.0
      %126 = vst [vmem:[#allocation10 + $0x1a0] sm:$0xff] 0.0
      %127 = vst [vmem:[#allocation10 + $0x1a8] sm:$0xff] 0.0
      %128 = vst [vmem:[#allocation10 + $0x1b0] sm:$0xff] 0.0
      %129 = vst [vmem:[#allocation10 + $0x1b8] sm:$0xff] 0.0
      %130 = vst [vmem:[#allocation10 + $0x1c0] sm:$0xff] 0.0
      %131 = vst [vmem:[#allocation10 + $0x1c8] sm:$0xff] 0.0
      %132 = vst [vmem:[#allocation10 + $0x1d0] sm:$0xff] 0.0
      %133 = vst [vmem:[#allocation10 + $0x1d8] sm:$0xff] 0.0
      %134 = vst [vmem:[#allocation10 + $0x1e0] sm:$0xff] 0.0
      %135 = vst [vmem:[#allocation10 + $0x1e8] sm:$0xff] 0.0
      %136 = vst [vmem:[#allocation10 + $0x1f0] sm:$0xff] 0.0
      %137 = vst [vmem:[#allocation10 + $0x1f8] sm:$0xff] 0.0
    $region33: #{tpu_custom_call.1} parent=1 // pred_fallthru
      _
    %s138 = sld [smem:[#allocation4]]
    %p139 = scmp.lt.s32.totalorder 0, %s138
    // Predicated region
    $region34: #{tpu_custom_call.1} parent=1 // pred_check
      %p140 = pneg %p139
    $region35: #{tpu_custom_call.1} parent=1 // pred_check_branch
      %142 = sbr.rel (%p140) target = $region37
    $region36: #{tpu_custom_call.1} parent=1 // pred_region
      %v143 = vld [vmem:[#allocation10] sm:$0xff]
      %v144 = vld [vmem:[#allocation10 + $0x8] sm:$0xff]
      %v145 = vld [vmem:[#allocation10 + $0x10] sm:$0xff]
      %v146 = vld [vmem:[#allocation10 + $0x18] sm:$0xff]
      %v147 = vld [vmem:[#allocation10 + $0x20] sm:$0xff]
      %v148 = vld [vmem:[#allocation10 + $0x28] sm:$0xff]
      %v149 = vld [vmem:[#allocation10 + $0x30] sm:$0xff]
      %v150 = vld [vmem:[#allocation10 + $0x38] sm:$0xff]
      %v151 = vld [vmem:[#allocation10 + $0x40] sm:$0xff]
      %v152 = vld [vmem:[#allocation10 + $0x48] sm:$0xff]
      %v153 = vld [vmem:[#allocation10 + $0x50] sm:$0xff]
      %v154 = vld [vmem:[#allocation10 + $0x58] sm:$0xff]
      %v155 = vld [vmem:[#allocation10 + $0x60] sm:$0xff]
      %v156 = vld [vmem:[#allocation10 + $0x68] sm:$0xff]
      %v157 = vld [vmem:[#allocation10 + $0x70] sm:$0xff]
      %v158 = vld [vmem:[#allocation10 + $0x78] sm:$0xff]
      %v159 = vld [vmem:[#allocation10 + $0x80] sm:$0xff]
      %v160 = vld [vmem:[#allocation10 + $0x88] sm:$0xff]
      %v161 = vld [vmem:[#allocation10 + $0x90] sm:$0xff]
      %v162 = vld [vmem:[#allocation10 + $0x98] sm:$0xff]
      %v163 = vld [vmem:[#allocation10 + $0xa0] sm:$0xff]
      %v164 = vld [vmem:[#allocation10 + $0xa8] sm:$0xff]
      %v165 = vld [vmem:[#allocation10 + $0xb0] sm:$0xff]
      %v166 = vld [vmem:[#allocation10 + $0xb8] sm:$0xff]
      %v167 = vld [vmem:[#allocation10 + $0xc0] sm:$0xff]
      %v168 = vld [vmem:[#allocation10 + $0xc8] sm:$0xff]
      %v169 = vld [vmem:[#allocation10 + $0xd0] sm:$0xff]
      %v170 = vld [vmem:[#allocation10 + $0xd8] sm:$0xff]
      %v171 = vld [vmem:[#allocation10 + $0xe0] sm:$0xff]
      %v172 = vld [vmem:[#allocation10 + $0xe8] sm:$0xff]
      %v173 = vld [vmem:[#allocation10 + $0xf0] sm:$0xff]
      %v174 = vld [vmem:[#allocation10 + $0xf8] sm:$0xff]
      %v175 = vld [vmem:[#allocation10 + $0x100] sm:$0xff]
      %v176 = vld [vmem:[#allocation10 + $0x108] sm:$0xff]
      %v177 = vld [vmem:[#allocation10 + $0x110] sm:$0xff]
      %v178 = vld [vmem:[#allocation10 + $0x118] sm:$0xff]
      %v179 = vld [vmem:[#allocation10 + $0x120] sm:$0xff]
      %v180 = vld [vmem:[#allocation10 + $0x128] sm:$0xff]
      %v181 = vld [vmem:[#allocation10 + $0x130] sm:$0xff]
      %v182 = vld [vmem:[#allocation10 + $0x138] sm:$0xff]
      %v183 = vld [vmem:[#allocation10 + $0x140] sm:$0xff]
      %v184 = vld [vmem:[#allocation10 + $0x148] sm:$0xff]
      %v185 = vld [vmem:[#allocation10 + $0x150] sm:$0xff]
      %v186 = vld [vmem:[#allocation10 + $0x158] sm:$0xff]
      %v187 = vld [vmem:[#allocation10 + $0x160] sm:$0xff]
      %v188 = vld [vmem:[#allocation10 + $0x168] sm:$0xff]
      %v189 = vld [vmem:[#allocation10 + $0x170] sm:$0xff]
      %v190 = vld [vmem:[#allocation10 + $0x178] sm:$0xff]
      %v191 = vld [vmem:[#allocation10 + $0x180] sm:$0xff]
      %v192 = vld [vmem:[#allocation10 + $0x188] sm:$0xff]
      %v193 = vld [vmem:[#allocation10 + $0x190] sm:$0xff]
      %v194 = vld [vmem:[#allocation10 + $0x198] sm:$0xff]
      %v195 = vld [vmem:[#allocation10 + $0x1a0] sm:$0xff]
      %v196 = vld [vmem:[#allocation10 + $0x1a8] sm:$0xff]
      %v197 = vld [vmem:[#allocation10 + $0x1b0] sm:$0xff]
      %v198 = vld [vmem:[#allocation10 + $0x1b8] sm:$0xff]
      %v199 = vld [vmem:[#allocation10 + $0x1c0] sm:$0xff]
      %v200 = vld [vmem:[#allocation10 + $0x1c8] sm:$0xff]
      %v201 = vld [vmem:[#allocation10 + $0x1d0] sm:$0xff]
      %v202 = vld [vmem:[#allocation10 + $0x1d8] sm:$0xff]
      %v203 = vld [vmem:[#allocation10 + $0x1e0] sm:$0xff]
      %v204 = vld [vmem:[#allocation10 + $0x1e8] sm:$0xff]
      %v205 = vld [vmem:[#allocation10 + $0x1f0] sm:$0xff]
      %v206 = vld [vmem:[#allocation10 + $0x1f8] sm:$0xff]
      %v207 = vld [vmem:[#allocation5] sm:$0xff]
      %v208 = vld [vmem:[#allocation5 + $0x8] sm:$0xff]
      %v209 = vld [vmem:[#allocation5 + $0x10] sm:$0xff]
      %v210 = vld [vmem:[#allocation5 + $0x18] sm:$0xff]
      %v211 = vld [vmem:[#allocation5 + $0x20] sm:$0xff]
      %v212 = vld [vmem:[#allocation5 + $0x28] sm:$0xff]
      %v213 = vld [vmem:[#allocation5 + $0x30] sm:$0xff]
      %v214 = vld [vmem:[#allocation5 + $0x38] sm:$0xff]
      %v215 = vld [vmem:[#allocation5 + $0x40] sm:$0xff]
      %v216 = vld [vmem:[#allocation5 + $0x48] sm:$0xff]
      %v217 = vld [vmem:[#allocation5 + $0x50] sm:$0xff]
      %v218 = vld [vmem:[#allocation5 + $0x58] sm:$0xff]
      %v219 = vld [vmem:[#allocation5 + $0x60] sm:$0xff]
      %v220 = vld [vmem:[#allocation5 + $0x68] sm:$0xff]
      %v221 = vld [vmem:[#allocation5 + $0x70] sm:$0xff]
      %v222 = vld [vmem:[#allocation5 + $0x78] sm:$0xff]
      %v223 = vld [vmem:[#allocation5 + $0x80] sm:$0xff]
      %v224 = vld [vmem:[#allocation5 + $0x88] sm:$0xff]
      %v225 = vld [vmem:[#allocation5 + $0x90] sm:$0xff]
      %v226 = vld [vmem:[#allocation5 + $0x98] sm:$0xff]
      %v227 = vld [vmem:[#allocation5 + $0xa0] sm:$0xff]
      %v228 = vld [vmem:[#allocation5 + $0xa8] sm:$0xff]
      %v229 = vld [vmem:[#allocation5 + $0xb0] sm:$0xff]
      %v230 = vld [vmem:[#allocation5 + $0xb8] sm:$0xff]
      %v231 = vld [vmem:[#allocation5 + $0xc0] sm:$0xff]
      %v232 = vld [vmem:[#allocation5 + $0xc8] sm:$0xff]
      %v233 = vld [vmem:[#allocation5 + $0xd0] sm:$0xff]
      %v234 = vld [vmem:[#allocation5 + $0xd8] sm:$0xff]
      %v235 = vld [vmem:[#allocation5 + $0xe0] sm:$0xff]
      %v236 = vld [vmem:[#allocation5 + $0xe8] sm:$0xff]
      %v237 = vld [vmem:[#allocation5 + $0xf0] sm:$0xff]
      %v238 = vld [vmem:[#allocation5 + $0xf8] sm:$0xff]
      %v239 = vld [vmem:[#allocation5 + $0x100] sm:$0xff]
      %v240 = vld [vmem:[#allocation5 + $0x108] sm:$0xff]
      %v241 = vld [vmem:[#allocation5 + $0x110] sm:$0xff]
      %v242 = vld [vmem:[#allocation5 + $0x118] sm:$0xff]
      %v243 = vld [vmem:[#allocation5 + $0x120] sm:$0xff]
      %v244 = vld [vmem:[#allocation5 + $0x128] sm:$0xff]
      %v245 = vld [vmem:[#allocation5 + $0x130] sm:$0xff]
      %v246 = vld [vmem:[#allocation5 + $0x138] sm:$0xff]
      %v247 = vld [vmem:[#allocation5 + $0x140] sm:$0xff]
      %v248 = vld [vmem:[#allocation5 + $0x148] sm:$0xff]
      %v249 = vld [vmem:[#allocation5 + $0x150] sm:$0xff]
      %v250 = vld [vmem:[#allocation5 + $0x158] sm:$0xff]
      %v251 = vld [vmem:[#allocation5 + $0x160] sm:$0xff]
      %v252 = vld [vmem:[#allocation5 + $0x168] sm:$0xff]
      %v253 = vld [vmem:[#allocation5 + $0x170] sm:$0xff]
      %v254 = vld [vmem:[#allocation5 + $0x178] sm:$0xff]
      %v255 = vld [vmem:[#allocation5 + $0x180] sm:$0xff]
      %v256 = vld [vmem:[#allocation5 + $0x188] sm:$0xff]
      %v257 = vld [vmem:[#allocation5 + $0x190] sm:$0xff]
      %v258 = vld [vmem:[#allocation5 + $0x198] sm:$0xff]
      %v259 = vld [vmem:[#allocation5 + $0x1a0] sm:$0xff]
      %v260 = vld [vmem:[#allocation5 + $0x1a8] sm:$0xff]
      %v261 = vld [vmem:[#allocation5 + $0x1b0] sm:$0xff]
      %v262 = vld [vmem:[#allocation5 + $0x1b8] sm:$0xff]
      %v263 = vld [vmem:[#allocation5 + $0x1c0] sm:$0xff]
      %v264 = vld [vmem:[#allocation5 + $0x1c8] sm:$0xff]
      %v265 = vld [vmem:[#allocation5 + $0x1d0] sm:$0xff]
      %v266 = vld [vmem:[#allocation5 + $0x1d8] sm:$0xff]
      %v267 = vld [vmem:[#allocation5 + $0x1e0] sm:$0xff]
      %v268 = vld [vmem:[#allocation5 + $0x1e8] sm:$0xff]
      %v269 = vld [vmem:[#allocation5 + $0x1f0] sm:$0xff]
      %v270 = vld [vmem:[#allocation5 + $0x1f8] sm:$0xff]
      %v271 = vld [vmem:[#allocation5 + $0x200] sm:$0xff]
      %v272 = vld [vmem:[#allocation5 + $0x208] sm:$0xff]
      %v273 = vld [vmem:[#allocation5 + $0x210] sm:$0xff]
      %v274 = vld [vmem:[#allocation5 + $0x218] sm:$0xff]
      %v275 = vld [vmem:[#allocation5 + $0x220] sm:$0xff]
      %v276 = vld [vmem:[#allocation5 + $0x228] sm:$0xff]
      %v277 = vld [vmem:[#allocation5 + $0x230] sm:$0xff]
      %v278 = vld [vmem:[#allocation5 + $0x238] sm:$0xff]
      %v279 = vld [vmem:[#allocation5 + $0x240] sm:$0xff]
      %v280 = vld [vmem:[#allocation5 + $0x248] sm:$0xff]
      %v281 = vld [vmem:[#allocation5 + $0x250] sm:$0xff]
      %v282 = vld [vmem:[#allocation5 + $0x258] sm:$0xff]
      %v283 = vld [vmem:[#allocation5 + $0x260] sm:$0xff]
      %v284 = vld [vmem:[#allocation5 + $0x268] sm:$0xff]
      %v285 = vld [vmem:[#allocation5 + $0x270] sm:$0xff]
      %v286 = vld [vmem:[#allocation5 + $0x278] sm:$0xff]
      %v287 = vld [vmem:[#allocation5 + $0x280] sm:$0xff]
      %v288 = vld [vmem:[#allocation5 + $0x288] sm:$0xff]
      %v289 = vld [vmem:[#allocation5 + $0x290] sm:$0xff]
      %v290 = vld [vmem:[#allocation5 + $0x298] sm:$0xff]
      %v291 = vld [vmem:[#allocation5 + $0x2a0] sm:$0xff]
      %v292 = vld [vmem:[#allocation5 + $0x2a8] sm:$0xff]
      %v293 = vld [vmem:[#allocation5 + $0x2b0] sm:$0xff]
      %v294 = vld [vmem:[#allocation5 + $0x2b8] sm:$0xff]
      %v295 = vld [vmem:[#allocation5 + $0x2c0] sm:$0xff]
      %v296 = vld [vmem:[#allocation5 + $0x2c8] sm:$0xff]
      %v297 = vld [vmem:[#allocation5 + $0x2d0] sm:$0xff]
      %v298 = vld [vmem:[#allocation5 + $0x2d8] sm:$0xff]
      %v299 = vld [vmem:[#allocation5 + $0x2e0] sm:$0xff]
      %v300 = vld [vmem:[#allocation5 + $0x2e8] sm:$0xff]
      %v301 = vld [vmem:[#allocation5 + $0x2f0] sm:$0xff]
      %v302 = vld [vmem:[#allocation5 + $0x2f8] sm:$0xff]
      %v303 = vld [vmem:[#allocation5 + $0x300] sm:$0xff]
      %v304 = vld [vmem:[#allocation5 + $0x308] sm:$0xff]
      %v305 = vld [vmem:[#allocation5 + $0x310] sm:$0xff]
      %v306 = vld [vmem:[#allocation5 + $0x318] sm:$0xff]
      %v307 = vld [vmem:[#allocation5 + $0x320] sm:$0xff]
      %v308 = vld [vmem:[#allocation5 + $0x328] sm:$0xff]
      %v309 = vld [vmem:[#allocation5 + $0x330] sm:$0xff]
      %v310 = vld [vmem:[#allocation5 + $0x338] sm:$0xff]
      %v311 = vld [vmem:[#allocation5 + $0x340] sm:$0xff]
      %v312 = vld [vmem:[#allocation5 + $0x348] sm:$0xff]
      %v313 = vld [vmem:[#allocation5 + $0x350] sm:$0xff]
      %v314 = vld [vmem:[#allocation5 + $0x358] sm:$0xff]
      %v315 = vld [vmem:[#allocation5 + $0x360] sm:$0xff]
      %v316 = vld [vmem:[#allocation5 + $0x368] sm:$0xff]
      %v317 = vld [vmem:[#allocation5 + $0x370] sm:$0xff]
      %v318 = vld [vmem:[#allocation5 + $0x378] sm:$0xff]
      %v319 = vld [vmem:[#allocation5 + $0x380] sm:$0xff]
      %v320 = vld [vmem:[#allocation5 + $0x388] sm:$0xff]
      %v321 = vld [vmem:[#allocation5 + $0x390] sm:$0xff]
      %v322 = vld [vmem:[#allocation5 + $0x398] sm:$0xff]
      %v323 = vld [vmem:[#allocation5 + $0x3a0] sm:$0xff]
      %v324 = vld [vmem:[#allocation5 + $0x3a8] sm:$0xff]
      %v325 = vld [vmem:[#allocation5 + $0x3b0] sm:$0xff]
      %v326 = vld [vmem:[#allocation5 + $0x3b8] sm:$0xff]
      %v327 = vld [vmem:[#allocation5 + $0x3c0] sm:$0xff]
      %v328 = vld [vmem:[#allocation5 + $0x3c8] sm:$0xff]
      %v329 = vld [vmem:[#allocation5 + $0x3d0] sm:$0xff]
      %v330 = vld [vmem:[#allocation5 + $0x3d8] sm:$0xff]
      %v331 = vld [vmem:[#allocation5 + $0x3e0] sm:$0xff]
      %v332 = vld [vmem:[#allocation5 + $0x3e8] sm:$0xff]
      %v333 = vld [vmem:[#allocation5 + $0x3f0] sm:$0xff]
      %v334 = vld [vmem:[#allocation5 + $0x3f8] sm:$0xff]
      %v335 = vld [vmem:[#allocation8] sm:$0xf]
      %v336 = vld [vmem:[#allocation8 + $0x4] sm:$0xf]
      %v337 = vld [vmem:[#allocation8 + $0x8] sm:$0xf]
      %v338 = vld [vmem:[#allocation8 + $0xc] sm:$0xf]
      %v339 = vld [vmem:[#allocation8 + $0x10] sm:$0xf]
      %v340 = vld [vmem:[#allocation8 + $0x14] sm:$0xf]
      %v341 = vld [vmem:[#allocation8 + $0x18] sm:$0xf]
      %v342 = vld [vmem:[#allocation8 + $0x1c] sm:$0xf]
      %v343 = vld [vmem:[#allocation8 + $0x20] sm:$0xf]
      %v344 = vld [vmem:[#allocation8 + $0x24] sm:$0xf]
      %v345 = vld [vmem:[#allocation8 + $0x28] sm:$0xf]
      %v346 = vld [vmem:[#allocation8 + $0x2c] sm:$0xf]
      %v347 = vld [vmem:[#allocation8 + $0x30] sm:$0xf]
      %v348 = vld [vmem:[#allocation8 + $0x34] sm:$0xf]
      %v349 = vld [vmem:[#allocation8 + $0x38] sm:$0xf]
      %v350 = vld [vmem:[#allocation8 + $0x3c] sm:$0xf]
      %v351 = vld [vmem:[#allocation8 + $0x40] sm:$0xf]
      %v352 = vld [vmem:[#allocation8 + $0x44] sm:$0xf]
      %v353 = vld [vmem:[#allocation8 + $0x48] sm:$0xf]
      %v354 = vld [vmem:[#allocation8 + $0x4c] sm:$0xf]
      %v355 = vld [vmem:[#allocation8 + $0x50] sm:$0xf]
      %v356 = vld [vmem:[#allocation8 + $0x54] sm:$0xf]
      %v357 = vld [vmem:[#allocation8 + $0x58] sm:$0xf]
      %v358 = vld [vmem:[#allocation8 + $0x5c] sm:$0xf]
      %v359 = vld [vmem:[#allocation8 + $0x60] sm:$0xf]
      %v360 = vld [vmem:[#allocation8 + $0x64] sm:$0xf]
      %v361 = vld [vmem:[#allocation8 + $0x68] sm:$0xf]
      %v362 = vld [vmem:[#allocation8 + $0x6c] sm:$0xf]
      %v363 = vld [vmem:[#allocation8 + $0x70] sm:$0xf]
      %v364 = vld [vmem:[#allocation8 + $0x74] sm:$0xf]
      %v365 = vld [vmem:[#allocation8 + $0x78] sm:$0xf]
      %v366 = vld [vmem:[#allocation8 + $0x7c] sm:$0xf]
      %v367 = vld [vmem:[#allocation8 + $0x80] sm:$0xf]
      %v368 = vld [vmem:[#allocation8 + $0x84] sm:$0xf]
      %v369 = vld [vmem:[#allocation8 + $0x88] sm:$0xf]
      %v370 = vld [vmem:[#allocation8 + $0x8c] sm:$0xf]
      %v371 = vld [vmem:[#allocation8 + $0x90] sm:$0xf]
      %v372 = vld [vmem:[#allocation8 + $0x94] sm:$0xf]
      %v373 = vld [vmem:[#allocation8 + $0x98] sm:$0xf]
      %v374 = vld [vmem:[#allocation8 + $0x9c] sm:$0xf]
      %v375 = vld [vmem:[#allocation8 + $0xa0] sm:$0xf]
      %v376 = vld [vmem:[#allocation8 + $0xa4] sm:$0xf]
      %v377 = vld [vmem:[#allocation8 + $0xa8] sm:$0xf]
      %v378 = vld [vmem:[#allocation8 + $0xac] sm:$0xf]
      %v379 = vld [vmem:[#allocation8 + $0xb0] sm:$0xf]
      %v380 = vld [vmem:[#allocation8 + $0xb4] sm:$0xf]
      %v381 = vld [vmem:[#allocation8 + $0xb8] sm:$0xf]
      %v382 = vld [vmem:[#allocation8 + $0xbc] sm:$0xf]
      %v383 = vld [vmem:[#allocation8 + $0xc0] sm:$0xf]
      %v384 = vld [vmem:[#allocation8 + $0xc4] sm:$0xf]
      %v385 = vld [vmem:[#allocation8 + $0xc8] sm:$0xf]
      %v386 = vld [vmem:[#allocation8 + $0xcc] sm:$0xf]
      %v387 = vld [vmem:[#allocation8 + $0xd0] sm:$0xf]
      %v388 = vld [vmem:[#allocation8 + $0xd4] sm:$0xf]
      %v389 = vld [vmem:[#allocation8 + $0xd8] sm:$0xf]
      %v390 = vld [vmem:[#allocation8 + $0xdc] sm:$0xf]
      %v391 = vld [vmem:[#allocation8 + $0xe0] sm:$0xf]
      %v392 = vld [vmem:[#allocation8 + $0xe4] sm:$0xf]
      %v393 = vld [vmem:[#allocation8 + $0xe8] sm:$0xf]
      %v394 = vld [vmem:[#allocation8 + $0xec] sm:$0xf]
      %v395 = vld [vmem:[#allocation8 + $0xf0] sm:$0xf]
      %v396 = vld [vmem:[#allocation8 + $0xf4] sm:$0xf]
      %v397 = vld [vmem:[#allocation8 + $0xf8] sm:$0xf]
      %v398 = vld [vmem:[#allocation8 + $0xfc] sm:$0xf]
      %v527 = vunpack.c.l.b16 %v207
      %v528 = vunpack.c.h.b16 %v207
      %v529 = vunpack.c.l.b16 %v208
      %v530 = vunpack.c.h.b16 %v208
      %v531 = vunpack.c.l.b16 %v209
      %v532 = vunpack.c.h.b16 %v209
      %v533 = vunpack.c.l.b16 %v210
      %v534 = vunpack.c.h.b16 %v210
      %v535 = vunpack.c.l.b16 %v211
      %v536 = vunpack.c.h.b16 %v211
      %v537 = vunpack.c.l.b16 %v212
      %v538 = vunpack.c.h.b16 %v212
      %v539 = vunpack.c.l.b16 %v213
      %v540 = vunpack.c.h.b16 %v213
      %v541 = vunpack.c.l.b16 %v214
      %v542 = vunpack.c.h.b16 %v214
      %v543 = vunpack.c.l.b16 %v215
      %v544 = vunpack.c.h.b16 %v215
      %v545 = vunpack.c.l.b16 %v216
      %v546 = vunpack.c.h.b16 %v216
      %v547 = vunpack.c.l.b16 %v217
      %v548 = vunpack.c.h.b16 %v217
      %v549 = vunpack.c.l.b16 %v218
      %v550 = vunpack.c.h.b16 %v218
      %v551 = vunpack.c.l.b16 %v219
      %v552 = vunpack.c.h.b16 %v219
      %v553 = vunpack.c.l.b16 %v220
      %v554 = vunpack.c.h.b16 %v220
      %v555 = vunpack.c.l.b16 %v221
      %v556 = vunpack.c.h.b16 %v221
      %v557 = vunpack.c.l.b16 %v222
      %v558 = vunpack.c.h.b16 %v222
      %v559 = vunpack.c.l.b16 %v223
      %v560 = vunpack.c.h.b16 %v223
      %v561 = vunpack.c.l.b16 %v224
      %v562 = vunpack.c.h.b16 %v224
      %v563 = vunpack.c.l.b16 %v225
      %v564 = vunpack.c.h.b16 %v225
      %v565 = vunpack.c.l.b16 %v226
      %v566 = vunpack.c.h.b16 %v226
      %v567 = vunpack.c.l.b16 %v227
      %v568 = vunpack.c.h.b16 %v227
      %v569 = vunpack.c.l.b16 %v228
      %v570 = vunpack.c.h.b16 %v228
      %v571 = vunpack.c.l.b16 %v229
      %v572 = vunpack.c.h.b16 %v229
      %v573 = vunpack.c.l.b16 %v230
      %v574 = vunpack.c.h.b16 %v230
      %v575 = vunpack.c.l.b16 %v231
      %v576 = vunpack.c.h.b16 %v231
      %v577 = vunpack.c.l.b16 %v232
      %v578 = vunpack.c.h.b16 %v232
      %v579 = vunpack.c.l.b16 %v233
      %v580 = vunpack.c.h.b16 %v233
      %v581 = vunpack.c.l.b16 %v234
      %v582 = vunpack.c.h.b16 %v234
      %v583 = vunpack.c.l.b16 %v235
      %v584 = vunpack.c.h.b16 %v235
      %v585 = vunpack.c.l.b16 %v236
      %v586 = vunpack.c.h.b16 %v236
      %v587 = vunpack.c.l.b16 %v237
      %v588 = vunpack.c.h.b16 %v237
      %v589 = vunpack.c.l.b16 %v238
      %v590 = vunpack.c.h.b16 %v238
      %v591 = vunpack.c.l.b16 %v239
      %v592 = vunpack.c.h.b16 %v239
      %v593 = vunpack.c.l.b16 %v240
      %v594 = vunpack.c.h.b16 %v240
      %v595 = vunpack.c.l.b16 %v241
      %v596 = vunpack.c.h.b16 %v241
      %v597 = vunpack.c.l.b16 %v242
      %v598 = vunpack.c.h.b16 %v242
      %v599 = vunpack.c.l.b16 %v243
      %v600 = vunpack.c.h.b16 %v243
      %v601 = vunpack.c.l.b16 %v244
      %v602 = vunpack.c.h.b16 %v244
      %v603 = vunpack.c.l.b16 %v245
      %v604 = vunpack.c.h.b16 %v245
      %v605 = vunpack.c.l.b16 %v246
      %v606 = vunpack.c.h.b16 %v246
      %v607 = vunpack.c.l.b16 %v247
      %v608 = vunpack.c.h.b16 %v247
      %v609 = vunpack.c.l.b16 %v248
      %v610 = vunpack.c.h.b16 %v248
      %v611 = vunpack.c.l.b16 %v249
      %v612 = vunpack.c.h.b16 %v249
      %v613 = vunpack.c.l.b16 %v250
      %v614 = vunpack.c.h.b16 %v250
      %v615 = vunpack.c.l.b16 %v251
      %v616 = vunpack.c.h.b16 %v251
      %v617 = vunpack.c.l.b16 %v252
      %v618 = vunpack.c.h.b16 %v252
      %v619 = vunpack.c.l.b16 %v253
      %v620 = vunpack.c.h.b16 %v253
      %v621 = vunpack.c.l.b16 %v254
      %v622 = vunpack.c.h.b16 %v254
      %v623 = vunpack.c.l.b16 %v255
      %v624 = vunpack.c.h.b16 %v255
      %v625 = vunpack.c.l.b16 %v256
      %v626 = vunpack.c.h.b16 %v256
      %v627 = vunpack.c.l.b16 %v257
      %v628 = vunpack.c.h.b16 %v257
      %v629 = vunpack.c.l.b16 %v258
      %v630 = vunpack.c.h.b16 %v258
      %v631 = vunpack.c.l.b16 %v259
      %v632 = vunpack.c.h.b16 %v259
      %v633 = vunpack.c.l.b16 %v260
      %v634 = vunpack.c.h.b16 %v260
      %v635 = vunpack.c.l.b16 %v261
      %v636 = vunpack.c.h.b16 %v261
      %v637 = vunpack.c.l.b16 %v262
      %v638 = vunpack.c.h.b16 %v262
      %v639 = vunpack.c.l.b16 %v263
      %v640 = vunpack.c.h.b16 %v263
      %v641 = vunpack.c.l.b16 %v264
      %v642 = vunpack.c.h.b16 %v264
      %v643 = vunpack.c.l.b16 %v265
      %v644 = vunpack.c.h.b16 %v265
      %v645 = vunpack.c.l.b16 %v266
      %v646 = vunpack.c.h.b16 %v266
      %v647 = vunpack.c.l.b16 %v267
      %v648 = vunpack.c.h.b16 %v267
      %v649 = vunpack.c.l.b16 %v268
      %v650 = vunpack.c.h.b16 %v268
      %v651 = vunpack.c.l.b16 %v269
      %v652 = vunpack.c.h.b16 %v269
      %v653 = vunpack.c.l.b16 %v270
      %v654 = vunpack.c.h.b16 %v270
      %v655 = vunpack.c.l.b16 %v271
      %v656 = vunpack.c.h.b16 %v271
      %v657 = vunpack.c.l.b16 %v272
      %v658 = vunpack.c.h.b16 %v272
      %v659 = vunpack.c.l.b16 %v273
      %v660 = vunpack.c.h.b16 %v273
      %v661 = vunpack.c.l.b16 %v274
      %v662 = vunpack.c.h.b16 %v274
      %v663 = vunpack.c.l.b16 %v275
      %v664 = vunpack.c.h.b16 %v275
      %v665 = vunpack.c.l.b16 %v276
      %v666 = vunpack.c.h.b16 %v276
      %v667 = vunpack.c.l.b16 %v277
      %v668 = vunpack.c.h.b16 %v277
      %v669 = vunpack.c.l.b16 %v278
      %v670 = vunpack.c.h.b16 %v278
      %v671 = vunpack.c.l.b16 %v279
      %v672 = vunpack.c.h.b16 %v279
      %v673 = vunpack.c.l.b16 %v280
      %v674 = vunpack.c.h.b16 %v280
      %v675 = vunpack.c.l.b16 %v281
      %v676 = vunpack.c.h.b16 %v281
      %v677 = vunpack.c.l.b16 %v282
      %v678 = vunpack.c.h.b16 %v282
      %v679 = vunpack.c.l.b16 %v283
      %v680 = vunpack.c.h.b16 %v283
      %v681 = vunpack.c.l.b16 %v284
      %v682 = vunpack.c.h.b16 %v284
      %v683 = vunpack.c.l.b16 %v285
      %v684 = vunpack.c.h.b16 %v285
      %v685 = vunpack.c.l.b16 %v286
      %v686 = vunpack.c.h.b16 %v286
      %v687 = vunpack.c.l.b16 %v287
      %v688 = vunpack.c.h.b16 %v287
      %v689 = vunpack.c.l.b16 %v288
      %v690 = vunpack.c.h.b16 %v288
      %v691 = vunpack.c.l.b16 %v289
      %v692 = vunpack.c.h.b16 %v289
      %v693 = vunpack.c.l.b16 %v290
      %v694 = vunpack.c.h.b16 %v290
      %v695 = vunpack.c.l.b16 %v291
      %v696 = vunpack.c.h.b16 %v291
      %v697 = vunpack.c.l.b16 %v292
      %v698 = vunpack.c.h.b16 %v292
      %v699 = vunpack.c.l.b16 %v293
      %v700 = vunpack.c.h.b16 %v293
      %v701 = vunpack.c.l.b16 %v294
      %v702 = vunpack.c.h.b16 %v294
      %v703 = vunpack.c.l.b16 %v295
      %v704 = vunpack.c.h.b16 %v295
      %v705 = vunpack.c.l.b16 %v296
      %v706 = vunpack.c.h.b16 %v296
      %v707 = vunpack.c.l.b16 %v297
      %v708 = vunpack.c.h.b16 %v297
      %v709 = vunpack.c.l.b16 %v298
      %v710 = vunpack.c.h.b16 %v298
      %v711 = vunpack.c.l.b16 %v299
      %v712 = vunpack.c.h.b16 %v299
      %v713 = vunpack.c.l.b16 %v300
      %v714 = vunpack.c.h.b16 %v300
      %v715 = vunpack.c.l.b16 %v301
      %v716 = vunpack.c.h.b16 %v301
      %v717 = vunpack.c.l.b16 %v302
      %v718 = vunpack.c.h.b16 %v302
      %v719 = vunpack.c.l.b16 %v303
      %v720 = vunpack.c.h.b16 %v303
      %v721 = vunpack.c.l.b16 %v304
      %v722 = vunpack.c.h.b16 %v304
      %v723 = vunpack.c.l.b16 %v305
      %v724 = vunpack.c.h.b16 %v305
      %v725 = vunpack.c.l.b16 %v306
      %v726 = vunpack.c.h.b16 %v306
      %v727 = vunpack.c.l.b16 %v307
      %v728 = vunpack.c.h.b16 %v307
      %v729 = vunpack.c.l.b16 %v308
      %v730 = vunpack.c.h.b16 %v308
      %v731 = vunpack.c.l.b16 %v309
      %v732 = vunpack.c.h.b16 %v309
      %v733 = vunpack.c.l.b16 %v310
      %v734 = vunpack.c.h.b16 %v310
      %v735 = vunpack.c.l.b16 %v311
      %v736 = vunpack.c.h.b16 %v311
      %v737 = vunpack.c.l.b16 %v312
      %v738 = vunpack.c.h.b16 %v312
      %v739 = vunpack.c.l.b16 %v313
      %v740 = vunpack.c.h.b16 %v313
      %v741 = vunpack.c.l.b16 %v314
      %v742 = vunpack.c.h.b16 %v314
      %v743 = vunpack.c.l.b16 %v315
      %v744 = vunpack.c.h.b16 %v315
      %v745 = vunpack.c.l.b16 %v316
      %v746 = vunpack.c.h.b16 %v316
      %v747 = vunpack.c.l.b16 %v317
      %v748 = vunpack.c.h.b16 %v317
      %v749 = vunpack.c.l.b16 %v318
      %v750 = vunpack.c.h.b16 %v318
      %v751 = vunpack.c.l.b16 %v319
      %v752 = vunpack.c.h.b16 %v319
      %v753 = vunpack.c.l.b16 %v320
      %v754 = vunpack.c.h.b16 %v320
      %v755 = vunpack.c.l.b16 %v321
      %v756 = vunpack.c.h.b16 %v321
      %v757 = vunpack.c.l.b16 %v322
      %v758 = vunpack.c.h.b16 %v322
      %v759 = vunpack.c.l.b16 %v323
      %v760 = vunpack.c.h.b16 %v323
      %v761 = vunpack.c.l.b16 %v324
      %v762 = vunpack.c.h.b16 %v324
      %v763 = vunpack.c.l.b16 %v325
      %v764 = vunpack.c.h.b16 %v325
      %v765 = vunpack.c.l.b16 %v326
      %v766 = vunpack.c.h.b16 %v326
      %v767 = vunpack.c.l.b16 %v327
      %v768 = vunpack.c.h.b16 %v327
      %v769 = vunpack.c.l.b16 %v328
      %v770 = vunpack.c.h.b16 %v328
      %v771 = vunpack.c.l.b16 %v329
      %v772 = vunpack.c.h.b16 %v329
      %v773 = vunpack.c.l.b16 %v330
      %v774 = vunpack.c.h.b16 %v330
      %v775 = vunpack.c.l.b16 %v331
      %v776 = vunpack.c.h.b16 %v331
      %v777 = vunpack.c.l.b16 %v332
      %v778 = vunpack.c.h.b16 %v332
      %v779 = vunpack.c.l.b16 %v333
      %v780 = vunpack.c.h.b16 %v333
      %v781 = vunpack.c.l.b16 %v334
      %v782 = vunpack.c.h.b16 %v334
      %v783 = vpack.c.b16 %v531, %v527
      %v784 = vpack.c.b16 %v532, %v528
      %v785 = vpack.c.b16 %v533, %v529
      %v786 = vpack.c.b16 %v534, %v530
      %v787 = vpack.c.b16 %v539, %v535
      %v788 = vpack.c.b16 %v540, %v536
      %v789 = vpack.c.b16 %v541, %v537
      %v790 = vpack.c.b16 %v542, %v538
      %v791 = vpack.c.b16 %v547, %v543
      %v792 = vpack.c.b16 %v548, %v544
      %v793 = vpack.c.b16 %v549, %v545
      %v794 = vpack.c.b16 %v550, %v546
      %v795 = vpack.c.b16 %v555, %v551
      %v796 = vpack.c.b16 %v556, %v552
      %v797 = vpack.c.b16 %v557, %v553
      %v798 = vpack.c.b16 %v558, %v554
      %v799 = vpack.c.b16 %v563, %v559
      %v800 = vpack.c.b16 %v564, %v560
      %v801 = vpack.c.b16 %v565, %v561
      %v802 = vpack.c.b16 %v566, %v562
      %v803 = vpack.c.b16 %v571, %v567
      %v804 = vpack.c.b16 %v572, %v568
      %v805 = vpack.c.b16 %v573, %v569
      %v806 = vpack.c.b16 %v574, %v570
      %v807 = vpack.c.b16 %v579, %v575
      %v808 = vpack.c.b16 %v580, %v576
      %v809 = vpack.c.b16 %v581, %v577
      %v810 = vpack.c.b16 %v582, %v578
      %v811 = vpack.c.b16 %v587, %v583
      %v812 = vpack.c.b16 %v588, %v584
      %v813 = vpack.c.b16 %v589, %v585
      %v814 = vpack.c.b16 %v590, %v586
      %v815 = vpack.c.b16 %v595, %v591
      %v816 = vpack.c.b16 %v596, %v592
      %v817 = vpack.c.b16 %v597, %v593
      %v818 = vpack.c.b16 %v598, %v594
      %v819 = vpack.c.b16 %v603, %v599
      %v820 = vpack.c.b16 %v604, %v600
      %v821 = vpack.c.b16 %v605, %v601
      %v822 = vpack.c.b16 %v606, %v602
      %v823 = vpack.c.b16 %v611, %v607
      %v824 = vpack.c.b16 %v612, %v608
      %v825 = vpack.c.b16 %v613, %v609
      %v826 = vpack.c.b16 %v614, %v610
      %v827 = vpack.c.b16 %v619, %v615
      %v828 = vpack.c.b16 %v620, %v616
      %v829 = vpack.c.b16 %v621, %v617
      %v830 = vpack.c.b16 %v622, %v618
      %v831 = vpack.c.b16 %v627, %v623
      %v832 = vpack.c.b16 %v628, %v624
      %v833 = vpack.c.b16 %v629, %v625
      %v834 = vpack.c.b16 %v630, %v626
      %v835 = vpack.c.b16 %v635, %v631
      %v836 = vpack.c.b16 %v636, %v632
      %v837 = vpack.c.b16 %v637, %v633
      %v838 = vpack.c.b16 %v638, %v634
      %v839 = vpack.c.b16 %v643, %v639
      %v840 = vpack.c.b16 %v644, %v640
      %v841 = vpack.c.b16 %v645, %v641
      %v842 = vpack.c.b16 %v646, %v642
      %v843 = vpack.c.b16 %v651, %v647
      %v844 = vpack.c.b16 %v652, %v648
      %v845 = vpack.c.b16 %v653, %v649
      %v846 = vpack.c.b16 %v654, %v650
      %v847 = vpack.c.b16 %v659, %v655
      %v848 = vpack.c.b16 %v660, %v656
      %v849 = vpack.c.b16 %v661, %v657
      %v850 = vpack.c.b16 %v662, %v658
      %v851 = vpack.c.b16 %v667, %v663
      %v852 = vpack.c.b16 %v668, %v664
      %v853 = vpack.c.b16 %v669, %v665
      %v854 = vpack.c.b16 %v670, %v666
      %v855 = vpack.c.b16 %v675, %v671
      %v856 = vpack.c.b16 %v676, %v672
      %v857 = vpack.c.b16 %v677, %v673
      %v858 = vpack.c.b16 %v678, %v674
      %v859 = vpack.c.b16 %v683, %v679
      %v860 = vpack.c.b16 %v684, %v680
      %v861 = vpack.c.b16 %v685, %v681
      %v862 = vpack.c.b16 %v686, %v682
      %v863 = vpack.c.b16 %v691, %v687
      %v864 = vpack.c.b16 %v692, %v688
      %v865 = vpack.c.b16 %v693, %v689
      %v866 = vpack.c.b16 %v694, %v690
      %v867 = vpack.c.b16 %v699, %v695
      %v868 = vpack.c.b16 %v700, %v696
      %v869 = vpack.c.b16 %v701, %v697
      %v870 = vpack.c.b16 %v702, %v698
      %v871 = vpack.c.b16 %v707, %v703
      %v872 = vpack.c.b16 %v708, %v704
      %v873 = vpack.c.b16 %v709, %v705
      %v874 = vpack.c.b16 %v710, %v706
      %v875 = vpack.c.b16 %v715, %v711
      %v876 = vpack.c.b16 %v716, %v712
      %v877 = vpack.c.b16 %v717, %v713
      %v878 = vpack.c.b16 %v718, %v714
      %v879 = vpack.c.b16 %v723, %v719
      %v880 = vpack.c.b16 %v724, %v720
      %v881 = vpack.c.b16 %v725, %v721
      %v882 = vpack.c.b16 %v726, %v722
      %v883 = vpack.c.b16 %v731, %v727
      %v884 = vpack.c.b16 %v732, %v728
      %v885 = vpack.c.b16 %v733, %v729
      %v886 = vpack.c.b16 %v734, %v730
      %v887 = vpack.c.b16 %v739, %v735
      %v888 = vpack.c.b16 %v740, %v736
      %v889 = vpack.c.b16 %v741, %v737
      %v890 = vpack.c.b16 %v742, %v738
      %v891 = vpack.c.b16 %v747, %v743
      %v892 = vpack.c.b16 %v748, %v744
      %v893 = vpack.c.b16 %v749, %v745
      %v894 = vpack.c.b16 %v750, %v746
      %v895 = vpack.c.b16 %v755, %v751
      %v896 = vpack.c.b16 %v756, %v752
      %v897 = vpack.c.b16 %v757, %v753
      %v898 = vpack.c.b16 %v758, %v754
      %v899 = vpack.c.b16 %v763, %v759
      %v900 = vpack.c.b16 %v764, %v760
      %v901 = vpack.c.b16 %v765, %v761
      %v902 = vpack.c.b16 %v766, %v762
      %v903 = vpack.c.b16 %v771, %v767
      %v904 = vpack.c.b16 %v772, %v768
      %v905 = vpack.c.b16 %v773, %v769
      %v906 = vpack.c.b16 %v774, %v770
      %v907 = vpack.c.b16 %v779, %v775
      %v908 = vpack.c.b16 %v780, %v776
      %v909 = vpack.c.b16 %v781, %v777
      %v910 = vpack.c.b16 %v782, %v778
      %v1103 = vunpack.c.l.b16 %v335
      %v1104 = vunpack.c.l.b16 %v336
      %v1105 = vunpack.c.l.b16 %v337
      %v1106 = vunpack.c.l.b16 %v338
      %v1107 = vunpack.c.l.b16 %v339
      %v1108 = vunpack.c.l.b16 %v340
      %v1109 = vunpack.c.l.b16 %v341
      %v1110 = vunpack.c.l.b16 %v342
      %v1111 = vunpack.c.l.b16 %v343
      %v1112 = vunpack.c.l.b16 %v344
      %v1113 = vunpack.c.l.b16 %v345
      %v1114 = vunpack.c.l.b16 %v346
      %v1115 = vunpack.c.l.b16 %v347
      %v1116 = vunpack.c.l.b16 %v348
      %v1117 = vunpack.c.l.b16 %v349
      %v1118 = vunpack.c.l.b16 %v350
      %v1119 = vunpack.c.l.b16 %v351
      %v1120 = vunpack.c.l.b16 %v352
      %v1121 = vunpack.c.l.b16 %v353
      %v1122 = vunpack.c.l.b16 %v354
      %v1123 = vunpack.c.l.b16 %v355
      %v1124 = vunpack.c.l.b16 %v356
      %v1125 = vunpack.c.l.b16 %v357
      %v1126 = vunpack.c.l.b16 %v358
      %v1127 = vunpack.c.l.b16 %v359
      %v1128 = vunpack.c.l.b16 %v360
      %v1129 = vunpack.c.l.b16 %v361
      %v1130 = vunpack.c.l.b16 %v362
      %v1131 = vunpack.c.l.b16 %v363
      %v1132 = vunpack.c.l.b16 %v364
      %v1133 = vunpack.c.l.b16 %v365
      %v1134 = vunpack.c.l.b16 %v366
      %v1135 = vunpack.c.l.b16 %v367
      %v1136 = vunpack.c.l.b16 %v368
      %v1137 = vunpack.c.l.b16 %v369
      %v1138 = vunpack.c.l.b16 %v370
      %v1139 = vunpack.c.l.b16 %v371
      %v1140 = vunpack.c.l.b16 %v372
      %v1141 = vunpack.c.l.b16 %v373
      %v1142 = vunpack.c.l.b16 %v374
      %v1143 = vunpack.c.l.b16 %v375
      %v1144 = vunpack.c.l.b16 %v376
      %v1145 = vunpack.c.l.b16 %v377
      %v1146 = vunpack.c.l.b16 %v378
      %v1147 = vunpack.c.l.b16 %v379
      %v1148 = vunpack.c.l.b16 %v380
      %v1149 = vunpack.c.l.b16 %v381
      %v1150 = vunpack.c.l.b16 %v382
      %v1151 = vunpack.c.l.b16 %v383
      %v1152 = vunpack.c.l.b16 %v384
      %v1153 = vunpack.c.l.b16 %v385
      %v1154 = vunpack.c.l.b16 %v386
      %v1155 = vunpack.c.l.b16 %v387
      %v1156 = vunpack.c.l.b16 %v388
      %v1157 = vunpack.c.l.b16 %v389
      %v1158 = vunpack.c.l.b16 %v390
      %v1159 = vunpack.c.l.b16 %v391
      %v1160 = vunpack.c.l.b16 %v392
      %v1161 = vunpack.c.l.b16 %v393
      %v1162 = vunpack.c.l.b16 %v394
      %v1163 = vunpack.c.l.b16 %v395
      %v1164 = vunpack.c.l.b16 %v396
      %v1165 = vunpack.c.l.b16 %v397
      %v1166 = vunpack.c.l.b16 %v398
      %v1167 = vpack.c.b16 %v1104, %v1103
      %v1168 = vpack.c.b16 %v1106, %v1105
      %v1169 = vpack.c.b16 %v1108, %v1107
      %v1170 = vpack.c.b16 %v1110, %v1109
      %v1171 = vpack.c.b16 %v1112, %v1111
      %v1172 = vpack.c.b16 %v1114, %v1113
      %v1173 = vpack.c.b16 %v1116, %v1115
      %v1174 = vpack.c.b16 %v1118, %v1117
      %v1175 = vpack.c.b16 %v1120, %v1119
      %v1176 = vpack.c.b16 %v1122, %v1121
      %v1177 = vpack.c.b16 %v1124, %v1123
      %v1178 = vpack.c.b16 %v1126, %v1125
      %v1179 = vpack.c.b16 %v1128, %v1127
      %v1180 = vpack.c.b16 %v1130, %v1129
      %v1181 = vpack.c.b16 %v1132, %v1131
      %v1182 = vpack.c.b16 %v1134, %v1133
      %v1183 = vpack.c.b16 %v1136, %v1135
      %v1184 = vpack.c.b16 %v1138, %v1137
      %v1185 = vpack.c.b16 %v1140, %v1139
      %v1186 = vpack.c.b16 %v1142, %v1141
      %v1187 = vpack.c.b16 %v1144, %v1143
      %v1188 = vpack.c.b16 %v1146, %v1145
      %v1189 = vpack.c.b16 %v1148, %v1147
      %v1190 = vpack.c.b16 %v1150, %v1149
      %v1191 = vpack.c.b16 %v1152, %v1151
      %v1192 = vpack.c.b16 %v1154, %v1153
      %v1193 = vpack.c.b16 %v1156, %v1155
      %v1194 = vpack.c.b16 %v1158, %v1157
      %v1195 = vpack.c.b16 %v1160, %v1159
      %v1196 = vpack.c.b16 %v1162, %v1161
      %v1197 = vpack.c.b16 %v1164, %v1163
      %v1198 = vpack.c.b16 %v1166, %v1165
      %1231 = vmatprep.subr.bf16.mxu0 0
      %1232 = vmatpush1.bf16.msra.mxu0 %v1167
      %1233 = vmatprep.subr.bf16.mxu0 0
      %1234 = vmatpush1.bf16.msra.mxu0 %v1168
      %1235 = vmatprep.subr.bf16.mxu0 0
      %1236 = vmatpush1.bf16.msra.mxu0 %v1169
      %1237 = vmatprep.subr.bf16.mxu0 0
      %1238 = vmatpush1.bf16.msra.mxu0 %v1170
      %1239 = vmatprep.subr.bf16.mxu0 0
      %1240 = vmatpush1.bf16.msra.mxu0 %v1171
      %1241 = vmatprep.subr.bf16.mxu0 0
      %1242 = vmatpush1.bf16.msra.mxu0 %v1172
      %1243 = vmatprep.subr.bf16.mxu0 0
      %1244 = vmatpush1.bf16.msra.mxu0 %v1173
      %1245 = vmatprep.subr.bf16.mxu0 0
      %1246 = vmatpush1.bf16.msra.mxu0 %v1174
      %1247 = vmatprep.subr.bf16.mxu0 0
      %1248 = vmatpush1.bf16.msra.mxu0 %v1175
      %1249 = vmatprep.subr.bf16.mxu0 0
      %1250 = vmatpush1.bf16.msra.mxu0 %v1176
      %1251 = vmatprep.subr.bf16.mxu0 0
      %1252 = vmatpush1.bf16.msra.mxu0 %v1177
      %1253 = vmatprep.subr.bf16.mxu0 0
      %1254 = vmatpush1.bf16.msra.mxu0 %v1178
      %1255 = vmatprep.subr.bf16.mxu0 0
      %1256 = vmatpush1.bf16.msra.mxu0 %v1179
      %1257 = vmatprep.subr.bf16.mxu0 0
      %1258 = vmatpush1.bf16.msra.mxu0 %v1180
      %1259 = vmatprep.subr.bf16.mxu0 0
      %1260 = vmatpush1.bf16.msra.mxu0 %v1181
      %1261 = vmatprep.subr.bf16.mxu0 0
      %1262 = vmatpush1.bf16.msra.mxu0 %v1182
      %1263 = vmatprep.mubr.bf16.mxu0 %v784
      %1264 = vmatmul.mubr.bf16.gmra.mrb[0].mxu0 %v783
      %v1265 = vpop.f32.mrb[0].mxu0
      %v1266 = vadd.f32 0.0, %v1265
      %v1267 = vpop.f32.mrb[0].mxu0
      %v1268 = vpop.f32.mrb[0].mxu0
      %v1269 = vadd.f32 0.0, %v1268
      %v1270 = vpop.f32.mrb[0].mxu0
      %1271 = vmatprep.mubr.bf16.mxu0 %v788
      %1272 = vmatmul.mubr.bf16.gmra.mrb[0].mxu0 %v787
      %v1273 = vpop.f32.mrb[0].mxu0
      %v1274 = vadd.f32 0.0, %v1273
      %v1275 = vpop.f32.mrb[0].mxu0
      %v1276 = vpop.f32.mrb[0].mxu0
      %v1277 = vadd.f32 0.0, %v1276
      %v1278 = vpop.f32.mrb[0].mxu0
      %1279 = vmatprep.mubr.bf16.mxu0 %v792
      %1280 = vmatmul.mubr.bf16.gmra.mrb[0].mxu0 %v791
      %v1281 = vpop.f32.mrb[0].mxu0
      %v1282 = vadd.f32 0.0, %v1281
      %v1283 = vpop.f32.mrb[0].mxu0
      %v1284 = vpop.f32.mrb[0].mxu0
      %v1285 = vadd.f32 0.0, %v1284
      %v1286 = vpop.f32.mrb[0].mxu0
      %1287 = vmatprep.mubr.bf16.mxu0 %v796
      %1288 = vmatmul.mubr.bf16.gmra.mrb[0].mxu0 %v795
      %v1289 = vpop.f32.mrb[0].mxu0
      %v1290 = vadd.f32 0.0, %v1289
      %v1291 = vpop.f32.mrb[0].mxu0
      %v1292 = vpop.f32.mrb[0].mxu0
      %v1293 = vadd.f32 0.0, %v1292
      %v1294 = vpop.f32.mrb[0].mxu0
      %1295 = vmatprep.mubr.bf16.mxu0 %v800
      %1296 = vmatmul.mubr.bf16.gmra.mrb[0].mxu0 %v799
      %v1297 = vpop.f32.mrb[0].mxu0
      %v1298 = vadd.f32 0.0, %v1297
      %v1299 = vpop.f32.mrb[0].mxu0
      %v1300 = vpop.f32.mrb[0].mxu0
      %v1301 = vadd.f32 0.0, %v1300
      %v1302 = vpop.f32.mrb[0].mxu0
      %1303 = vmatprep.mubr.bf16.mxu0 %v804
      %1304 = vmatmul.mubr.bf16.gmra.mrb[0].mxu0 %v803
      %v1305 = vpop.f32.mrb[0].mxu0
      %v1306 = vadd.f32 0.0, %v1305
      %v1307 = vpop.f32.mrb[0].mxu0
      %v1308 = vpop.f32.mrb[0].mxu0
      %v1309 = vadd.f32 0.0, %v1308
      %v1310 = vpop.f32.mrb[0].mxu0
      %1311 = vmatprep.mubr.bf16.mxu0 %v808
      %1312 = vmatmul.mubr.bf16.gmra.mrb[0].mxu0 %v807
      %v1313 = vpop.f32.mrb[0].mxu0
      %v1314 = vadd.f32 0.0, %v1313
      %v1315 = vpop.f32.mrb[0].mxu0
      %v1316 = vpop.f32.mrb[0].mxu0
      %v1317 = vadd.f32 0.0, %v1316
      %v1318 = vpop.f32.mrb[0].mxu0
      %1319 = vmatprep.mubr.bf16.mxu0 %v812
      %1320 = vmatmul.mubr.bf16.gmra.mrb[0].mxu0 %v811
      %v1321 = vpop.f32.mrb[0].mxu0
      %v1322 = vadd.f32 0.0, %v1321
      %v1323 = vpop.f32.mrb[0].mxu0
      %v1324 = vpop.f32.mrb[0].mxu0
      %v1325 = vadd.f32 0.0, %v1324
      %v1326 = vpop.f32.mrb[0].mxu0
      %1327 = vmatprep.mubr.bf16.mxu0 %v816
      %1328 = vmatmul.mubr.bf16.gmra.mrb[0].mxu0 %v815
      %v1329 = vpop.f32.mrb[0].mxu0
      %v1330 = vadd.f32 0.0, %v1329
      %v1331 = vpop.f32.mrb[0].mxu0
      %v1332 = vpop.f32.mrb[0].mxu0
      %v1333 = vadd.f32 0.0, %v1332
      %v1334 = vpop.f32.mrb[0].mxu0
      %1335 = vmatprep.mubr.bf16.mxu0 %v820
      %1336 = vmatmul.mubr.bf16.gmra.mrb[0].mxu0 %v819
      %v1337 = vpop.f32.mrb[0].mxu0
      %v1338 = vadd.f32 0.0, %v1337
      %v1339 = vpop.f32.mrb[0].mxu0
      %v1340 = vpop.f32.mrb[0].mxu0
      %v1341 = vadd.f32 0.0, %v1340
      %v1342 = vpop.f32.mrb[0].mxu0
      %1343 = vmatprep.mubr.bf16.mxu0 %v824
      %1344 = vmatmul.mubr.bf16.gmra.mrb[0].mxu0 %v823
      %v1345 = vpop.f32.mrb[0].mxu0
      %v1346 = vadd.f32 0.0, %v1345
      %v1347 = vpop.f32.mrb[0].mxu0
      %v1348 = vpop.f32.mrb[0].mxu0
      %v1349 = vadd.f32 0.0, %v1348
      %v1350 = vpop.f32.mrb[0].mxu0
      %1351 = vmatprep.mubr.bf16.mxu0 %v828
      %1352 = vmatmul.mubr.bf16.gmra.mrb[0].mxu0 %v827
      %v1353 = vpop.f32.mrb[0].mxu0
      %v1354 = vadd.f32 0.0, %v1353
      %v1355 = vpop.f32.mrb[0].mxu0
      %v1356 = vpop.f32.mrb[0].mxu0
      %v1357 = vadd.f32 0.0, %v1356
      %v1358 = vpop.f32.mrb[0].mxu0
      %1359 = vmatprep.mubr.bf16.mxu0 %v832
      %1360 = vmatmul.mubr.bf16.gmra.mrb[0].mxu0 %v831
      %v1361 = vpop.f32.mrb[0].mxu0
      %v1362 = vadd.f32 0.0, %v1361
      %v1363 = vpop.f32.mrb[0].mxu0
      %v1364 = vpop.f32.mrb[0].mxu0
      %v1365 = vadd.f32 0.0, %v1364
      %v1366 = vpop.f32.mrb[0].mxu0
      %1367 = vmatprep.mubr.bf16.mxu0 %v836
      %1368 = vmatmul.mubr.bf16.gmra.mrb[0].mxu0 %v835
      %v1369 = vpop.f32.mrb[0].mxu0
      %v1370 = vadd.f32 0.0, %v1369
      %v1371 = vpop.f32.mrb[0].mxu0
      %v1372 = vpop.f32.mrb[0].mxu0
      %v1373 = vadd.f32 0.0, %v1372
      %v1374 = vpop.f32.mrb[0].mxu0
      %1375 = vmatprep.mubr.bf16.mxu0 %v840
      %1376 = vmatmul.mubr.bf16.gmra.mrb[0].mxu0 %v839
      %v1377 = vpop.f32.mrb[0].mxu0
      %v1378 = vadd.f32 0.0, %v1377
      %v1379 = vpop.f32.mrb[0].mxu0
      %v1380 = vpop.f32.mrb[0].mxu0
      %v1381 = vadd.f32 0.0, %v1380
      %v1382 = vpop.f32.mrb[0].mxu0
      %1383 = vmatprep.mubr.bf16.mxu0 %v844
      %1384 = vmatmul.mubr.bf16.gmra.mrb[0].mxu0 %v843
      %v1385 = vpop.f32.mrb[0].mxu0
      %v1386 = vadd.f32 0.0, %v1385
      %v1387 = vpop.f32.mrb[0].mxu0
      %v1388 = vpop.f32.mrb[0].mxu0
      %v1389 = vadd.f32 0.0, %v1388
      %v1390 = vpop.f32.mrb[0].mxu0
      %1391 = vmatprep.mubr.bf16.mxu0 %v848
      %1392 = vmatmul.mubr.bf16.gmra.mrb[0].mxu0 %v847
      %v1393 = vpop.f32.mrb[0].mxu0
      %v1394 = vadd.f32 0.0, %v1393
      %v1395 = vpop.f32.mrb[0].mxu0
      %v1396 = vpop.f32.mrb[0].mxu0
      %v1397 = vadd.f32 0.0, %v1396
      %v1398 = vpop.f32.mrb[0].mxu0
      %1399 = vmatprep.mubr.bf16.mxu0 %v852
      %1400 = vmatmul.mubr.bf16.gmra.mrb[0].mxu0 %v851
      %v1401 = vpop.f32.mrb[0].mxu0
      %v1402 = vadd.f32 0.0, %v1401
      %v1403 = vpop.f32.mrb[0].mxu0
      %v1404 = vpop.f32.mrb[0].mxu0
      %v1405 = vadd.f32 0.0, %v1404
      %v1406 = vpop.f32.mrb[0].mxu0
      %1407 = vmatprep.mubr.bf16.mxu0 %v856
      %1408 = vmatmul.mubr.bf16.gmra.mrb[0].mxu0 %v855
      %v1409 = vpop.f32.mrb[0].mxu0
      %v1410 = vadd.f32 0.0, %v1409
      %v1411 = vpop.f32.mrb[0].mxu0
      %v1412 = vpop.f32.mrb[0].mxu0
      %v1413 = vadd.f32 0.0, %v1412
      %v1414 = vpop.f32.mrb[0].mxu0
      %1415 = vmatprep.mubr.bf16.mxu0 %v860
      %1416 = vmatmul.mubr.bf16.gmra.mrb[0].mxu0 %v859
      %v1417 = vpop.f32.mrb[0].mxu0
      %v1418 = vadd.f32 0.0, %v1417
      %v1419 = vpop.f32.mrb[0].mxu0
      %v1420 = vpop.f32.mrb[0].mxu0
      %v1421 = vadd.f32 0.0, %v1420
      %v1422 = vpop.f32.mrb[0].mxu0
      %1423 = vmatprep.mubr.bf16.mxu0 %v864
      %1424 = vmatmul.mubr.bf16.gmra.mrb[0].mxu0 %v863
      %v1425 = vpop.f32.mrb[0].mxu0
      %v1426 = vadd.f32 0.0, %v1425
      %v1427 = vpop.f32.mrb[0].mxu0
      %v1428 = vpop.f32.mrb[0].mxu0
      %v1429 = vadd.f32 0.0, %v1428
      %v1430 = vpop.f32.mrb[0].mxu0
      %1431 = vmatprep.mubr.bf16.mxu0 %v868
      %1432 = vmatmul.mubr.bf16.gmra.mrb[0].mxu0 %v867
      %v1433 = vpop.f32.mrb[0].mxu0
      %v1434 = vadd.f32 0.0, %v1433
      %v1435 = vpop.f32.mrb[0].mxu0
      %v1436 = vpop.f32.mrb[0].mxu0
      %v1437 = vadd.f32 0.0, %v1436
      %v1438 = vpop.f32.mrb[0].mxu0
      %1439 = vmatprep.mubr.bf16.mxu0 %v872
      %1440 = vmatmul.mubr.bf16.gmra.mrb[0].mxu0 %v871
      %v1441 = vpop.f32.mrb[0].mxu0
      %v1442 = vadd.f32 0.0, %v1441
      %v1443 = vpop.f32.mrb[0].mxu0
      %v1444 = vpop.f32.mrb[0].mxu0
      %v1445 = vadd.f32 0.0, %v1444
      %v1446 = vpop.f32.mrb[0].mxu0
      %1447 = vmatprep.mubr.bf16.mxu0 %v876
      %1448 = vmatmul.mubr.bf16.gmra.mrb[0].mxu0 %v875
      %v1449 = vpop.f32.mrb[0].mxu0
      %v1450 = vadd.f32 0.0, %v1449
      %v1451 = vpop.f32.mrb[0].mxu0
      %v1452 = vpop.f32.mrb[0].mxu0
      %v1453 = vadd.f32 0.0, %v1452
      %v1454 = vpop.f32.mrb[0].mxu0
      %1455 = vmatprep.mubr.bf16.mxu0 %v880
      %1456 = vmatmul.mubr.bf16.gmra.mrb[0].mxu0 %v879
      %v1457 = vpop.f32.mrb[0].mxu0
      %v1458 = vadd.f32 0.0, %v1457
      %v1459 = vpop.f32.mrb[0].mxu0
      %v1460 = vpop.f32.mrb[0].mxu0
      %v1461 = vadd.f32 0.0, %v1460
      %v1462 = vpop.f32.mrb[0].mxu0
      %1463 = vmatprep.mubr.bf16.mxu0 %v884
      %1464 = vmatmul.mubr.bf16.gmra.mrb[0].mxu0 %v883
      %v1465 = vpop.f32.mrb[0].mxu0
      %v1466 = vadd.f32 0.0, %v1465
      %v1467 = vpop.f32.mrb[0].mxu0
      %v1468 = vpop.f32.mrb[0].mxu0
      %v1469 = vadd.f32 0.0, %v1468
      %v1470 = vpop.f32.mrb[0].mxu0
      %1471 = vmatprep.mubr.bf16.mxu0 %v888
      %1472 = vmatmul.mubr.bf16.gmra.mrb[0].mxu0 %v887
      %v1473 = vpop.f32.mrb[0].mxu0
      %v1474 = vadd.f32 0.0, %v1473
      %v1475 = vpop.f32.mrb[0].mxu0
      %v1476 = vpop.f32.mrb[0].mxu0
      %v1477 = vadd.f32 0.0, %v1476
      %v1478 = vpop.f32.mrb[0].mxu0
      %1479 = vmatprep.mubr.bf16.mxu0 %v892
      %1480 = vmatmul.mubr.bf16.gmra.mrb[0].mxu0 %v891
      %v1481 = vpop.f32.mrb[0].mxu0
      %v1482 = vadd.f32 0.0, %v1481
      %v1483 = vpop.f32.mrb[0].mxu0
      %v1484 = vpop.f32.mrb[0].mxu0
      %v1485 = vadd.f32 0.0, %v1484
      %v1486 = vpop.f32.mrb[0].mxu0
      %1487 = vmatprep.mubr.bf16.mxu0 %v896
      %1488 = vmatmul.mubr.bf16.gmra.mrb[0].mxu0 %v895
      %v1489 = vpop.f32.mrb[0].mxu0
      %v1490 = vadd.f32 0.0, %v1489
      %v1491 = vpop.f32.mrb[0].mxu0
      %v1492 = vpop.f32.mrb[0].mxu0
      %v1493 = vadd.f32 0.0, %v1492
      %v1494 = vpop.f32.mrb[0].mxu0
      %1495 = vmatprep.mubr.bf16.mxu0 %v900
      %1496 = vmatmul.mubr.bf16.gmra.mrb[0].mxu0 %v899
      %v1497 = vpop.f32.mrb[0].mxu0
      %v1498 = vadd.f32 0.0, %v1497
      %v1499 = vpop.f32.mrb[0].mxu0
      %v1500 = vpop.f32.mrb[0].mxu0
      %v1501 = vadd.f32 0.0, %v1500
      %v1502 = vpop.f32.mrb[0].mxu0
      %1503 = vmatprep.mubr.bf16.mxu0 %v904
      %1504 = vmatmul.mubr.bf16.gmra.mrb[0].mxu0 %v903
      %v1505 = vpop.f32.mrb[0].mxu0
      %v1506 = vadd.f32 0.0, %v1505
      %v1507 = vpop.f32.mrb[0].mxu0
      %v1508 = vpop.f32.mrb[0].mxu0
      %v1509 = vadd.f32 0.0, %v1508
      %v1510 = vpop.f32.mrb[0].mxu0
      %1511 = vmatprep.mubr.bf16.mxu0 %v908
      %1512 = vmatmul.mubr.bf16.gmra.mrb[0].mxu0 %v907
      %v1513 = vpop.f32.mrb[0].mxu0
      %v1514 = vadd.f32 0.0, %v1513
      %v1515 = vpop.f32.mrb[0].mxu0
      %v1516 = vpop.f32.mrb[0].mxu0
      %v1517 = vadd.f32 0.0, %v1516
      %v1518 = vpop.f32.mrb[0].mxu0
      %1519 = vdwg.mxu0
      %1520 = vmatprep.subr.bf16.mxu0 0
      %1521 = vmatpush1.bf16.msra.mxu0 %v1183
      %1522 = vmatprep.subr.bf16.mxu0 0
      %1523 = vmatpush1.bf16.msra.mxu0 %v1184
      %1524 = vmatprep.subr.bf16.mxu0 0
      %1525 = vmatpush1.bf16.msra.mxu0 %v1185
      %1526 = vmatprep.subr.bf16.mxu0 0
      %1527 = vmatpush1.bf16.msra.mxu0 %v1186
      %1528 = vmatprep.subr.bf16.mxu0 0
      %1529 = vmatpush1.bf16.msra.mxu0 %v1187
      %1530 = vmatprep.subr.bf16.mxu0 0
      %1531 = vmatpush1.bf16.msra.mxu0 %v1188
      %1532 = vmatprep.subr.bf16.mxu0 0
      %1533 = vmatpush1.bf16.msra.mxu0 %v1189
      %1534 = vmatprep.subr.bf16.mxu0 0
      %1535 = vmatpush1.bf16.msra.mxu0 %v1190
      %1536 = vmatprep.subr.bf16.mxu0 0
      %1537 = vmatpush1.bf16.msra.mxu0 %v1191
      %1538 = vmatprep.subr.bf16.mxu0 0
      %1539 = vmatpush1.bf16.msra.mxu0 %v1192
      %1540 = vmatprep.subr.bf16.mxu0 0
      %1541 = vmatpush1.bf16.msra.mxu0 %v1193
      %1542 = vmatprep.subr.bf16.mxu0 0
      %1543 = vmatpush1.bf16.msra.mxu0 %v1194
      %1544 = vmatprep.subr.bf16.mxu0 0
      %1545 = vmatpush1.bf16.msra.mxu0 %v1195
      %1546 = vmatprep.subr.bf16.mxu0 0
      %1547 = vmatpush1.bf16.msra.mxu0 %v1196
      %1548 = vmatprep.subr.bf16.mxu0 0
      %1549 = vmatpush1.bf16.msra.mxu0 %v1197
      %1550 = vmatprep.subr.bf16.mxu0 0
      %1551 = vmatpush1.bf16.msra.mxu0 %v1198
      %1552 = vmatprep.mubr.bf16.mxu0 %v786
      %1553 = vmatmul.mubr.bf16.gmra.mrb[0].mxu0 %v785
      %v1554 = vpop.f32.mrb[0].mxu0
      %v1555 = vadd.f32 %v1266, %v1554
      %v1556 = vpop.f32.mrb[0].mxu0
      %v1557 = vpop.f32.mrb[0].mxu0
      %v1558 = vadd.f32 %v1269, %v1557
      %v1559 = vpop.f32.mrb[0].mxu0
      %1560 = vmatprep.mubr.bf16.mxu0 %v790
      %1561 = vmatmul.mubr.bf16.gmra.mrb[0].mxu0 %v789
      %v1562 = vpop.f32.mrb[0].mxu0
      %v1563 = vadd.f32 %v1274, %v1562
      %v1564 = vpop.f32.mrb[0].mxu0
      %v1565 = vpop.f32.mrb[0].mxu0
      %v1566 = vadd.f32 %v1277, %v1565
      %v1567 = vpop.f32.mrb[0].mxu0
      %1568 = vmatprep.mubr.bf16.mxu0 %v794
      %1569 = vmatmul.mubr.bf16.gmra.mrb[0].mxu0 %v793
      %v1570 = vpop.f32.mrb[0].mxu0
      %v1571 = vadd.f32 %v1282, %v1570
      %v1572 = vpop.f32.mrb[0].mxu0
      %v1573 = vpop.f32.mrb[0].mxu0
      %v1574 = vadd.f32 %v1285, %v1573
      %v1575 = vpop.f32.mrb[0].mxu0
      %1576 = vmatprep.mubr.bf16.mxu0 %v798
      %1577 = vmatmul.mubr.bf16.gmra.mrb[0].mxu0 %v797
      %v1578 = vpop.f32.mrb[0].mxu0
      %v1579 = vadd.f32 %v1290, %v1578
      %v1580 = vpop.f32.mrb[0].mxu0
      %v1581 = vpop.f32.mrb[0].mxu0
      %v1582 = vadd.f32 %v1293, %v1581
      %v1583 = vpop.f32.mrb[0].mxu0
      %1584 = vmatprep.mubr.bf16.mxu0 %v802
      %1585 = vmatmul.mubr.bf16.gmra.mrb[0].mxu0 %v801
      %v1586 = vpop.f32.mrb[0].mxu0
      %v1587 = vadd.f32 %v1298, %v1586
      %v1588 = vpop.f32.mrb[0].mxu0
      %v1589 = vpop.f32.mrb[0].mxu0
      %v1590 = vadd.f32 %v1301, %v1589
      %v1591 = vpop.f32.mrb[0].mxu0
      %1592 = vmatprep.mubr.bf16.mxu0 %v806
      %1593 = vmatmul.mubr.bf16.gmra.mrb[0].mxu0 %v805
      %v1594 = vpop.f32.mrb[0].mxu0
      %v1595 = vadd.f32 %v1306, %v1594
      %v1596 = vpop.f32.mrb[0].mxu0
      %v1597 = vpop.f32.mrb[0].mxu0
      %v1598 = vadd.f32 %v1309, %v1597
      %v1599 = vpop.f32.mrb[0].mxu0
      %1600 = vmatprep.mubr.bf16.mxu0 %v810
      %1601 = vmatmul.mubr.bf16.gmra.mrb[0].mxu0 %v809
      %v1602 = vpop.f32.mrb[0].mxu0
      %v1603 = vadd.f32 %v1314, %v1602
      %v1604 = vpop.f32.mrb[0].mxu0
      %v1605 = vpop.f32.mrb[0].mxu0
      %v1606 = vadd.f32 %v1317, %v1605
      %v1607 = vpop.f32.mrb[0].mxu0
      %1608 = vmatprep.mubr.bf16.mxu0 %v814
      %1609 = vmatmul.mubr.bf16.gmra.mrb[0].mxu0 %v813
      %v1610 = vpop.f32.mrb[0].mxu0
      %v1611 = vadd.f32 %v1322, %v1610
      %v1612 = vpop.f32.mrb[0].mxu0
      %v1613 = vpop.f32.mrb[0].mxu0
      %v1614 = vadd.f32 %v1325, %v1613
      %v1615 = vpop.f32.mrb[0].mxu0
      %1616 = vmatprep.mubr.bf16.mxu0 %v818
      %1617 = vmatmul.mubr.bf16.gmra.mrb[0].mxu0 %v817
      %v1618 = vpop.f32.mrb[0].mxu0
      %v1619 = vadd.f32 %v1330, %v1618
      %v1620 = vpop.f32.mrb[0].mxu0
      %v1621 = vpop.f32.mrb[0].mxu0
      %v1622 = vadd.f32 %v1333, %v1621
      %v1623 = vpop.f32.mrb[0].mxu0
      %1624 = vmatprep.mubr.bf16.mxu0 %v822
      %1625 = vmatmul.mubr.bf16.gmra.mrb[0].mxu0 %v821
      %v1626 = vpop.f32.mrb[0].mxu0
      %v1627 = vadd.f32 %v1338, %v1626
      %v1628 = vpop.f32.mrb[0].mxu0
      %v1629 = vpop.f32.mrb[0].mxu0
      %v1630 = vadd.f32 %v1341, %v1629
      %v1631 = vpop.f32.mrb[0].mxu0
      %1632 = vmatprep.mubr.bf16.mxu0 %v826
      %1633 = vmatmul.mubr.bf16.gmra.mrb[0].mxu0 %v825
      %v1634 = vpop.f32.mrb[0].mxu0
      %v1635 = vadd.f32 %v1346, %v1634
      %v1636 = vpop.f32.mrb[0].mxu0
      %v1637 = vpop.f32.mrb[0].mxu0
      %v1638 = vadd.f32 %v1349, %v1637
      %v1639 = vpop.f32.mrb[0].mxu0
      %1640 = vmatprep.mubr.bf16.mxu0 %v830
      %1641 = vmatmul.mubr.bf16.gmra.mrb[0].mxu0 %v829
      %v1642 = vpop.f32.mrb[0].mxu0
      %v1643 = vadd.f32 %v1354, %v1642
      %v1644 = vpop.f32.mrb[0].mxu0
      %v1645 = vpop.f32.mrb[0].mxu0
      %v1646 = vadd.f32 %v1357, %v1645
      %v1647 = vpop.f32.mrb[0].mxu0
      %1648 = vmatprep.mubr.bf16.mxu0 %v834
      %1649 = vmatmul.mubr.bf16.gmra.mrb[0].mxu0 %v833
      %v1650 = vpop.f32.mrb[0].mxu0
      %v1651 = vadd.f32 %v1362, %v1650
      %v1652 = vpop.f32.mrb[0].mxu0
      %v1653 = vpop.f32.mrb[0].mxu0
      %v1654 = vadd.f32 %v1365, %v1653
      %v1655 = vpop.f32.mrb[0].mxu0
      %1656 = vmatprep.mubr.bf16.mxu0 %v838
      %1657 = vmatmul.mubr.bf16.gmra.mrb[0].mxu0 %v837
      %v1658 = vpop.f32.mrb[0].mxu0
      %v1659 = vadd.f32 %v1370, %v1658
      %v1660 = vpop.f32.mrb[0].mxu0
      %v1661 = vpop.f32.mrb[0].mxu0
      %v1662 = vadd.f32 %v1373, %v1661
      %v1663 = vpop.f32.mrb[0].mxu0
      %1664 = vmatprep.mubr.bf16.mxu0 %v842
      %1665 = vmatmul.mubr.bf16.gmra.mrb[0].mxu0 %v841
      %v1666 = vpop.f32.mrb[0].mxu0
      %v1667 = vadd.f32 %v1378, %v1666
      %v1668 = vpop.f32.mrb[0].mxu0
      %v1669 = vpop.f32.mrb[0].mxu0
      %v1670 = vadd.f32 %v1381, %v1669
      %v1671 = vpop.f32.mrb[0].mxu0
      %1672 = vmatprep.mubr.bf16.mxu0 %v846
      %1673 = vmatmul.mubr.bf16.gmra.mrb[0].mxu0 %v845
      %v1674 = vpop.f32.mrb[0].mxu0
      %v1675 = vadd.f32 %v1386, %v1674
      %v1676 = vpop.f32.mrb[0].mxu0
      %v1677 = vpop.f32.mrb[0].mxu0
      %v1678 = vadd.f32 %v1389, %v1677
      %v1679 = vpop.f32.mrb[0].mxu0
      %1680 = vmatprep.mubr.bf16.mxu0 %v850
      %1681 = vmatmul.mubr.bf16.gmra.mrb[0].mxu0 %v849
      %v1682 = vpop.f32.mrb[0].mxu0
      %v1683 = vadd.f32 %v1394, %v1682
      %v1684 = vpop.f32.mrb[0].mxu0
      %v1685 = vpop.f32.mrb[0].mxu0
      %v1686 = vadd.f32 %v1397, %v1685
      %v1687 = vpop.f32.mrb[0].mxu0
      %1688 = vmatprep.mubr.bf16.mxu0 %v854
      %1689 = vmatmul.mubr.bf16.gmra.mrb[0].mxu0 %v853
      %v1690 = vpop.f32.mrb[0].mxu0
      %v1691 = vadd.f32 %v1402, %v1690
      %v1692 = vpop.f32.mrb[0].mxu0
      %v1693 = vpop.f32.mrb[0].mxu0
      %v1694 = vadd.f32 %v1405, %v1693
      %v1695 = vpop.f32.mrb[0].mxu0
      %1696 = vmatprep.mubr.bf16.mxu0 %v858
      %1697 = vmatmul.mubr.bf16.gmra.mrb[0].mxu0 %v857
      %v1698 = vpop.f32.mrb[0].mxu0
      %v1699 = vadd.f32 %v1410, %v1698
      %v1700 = vpop.f32.mrb[0].mxu0
      %v1701 = vpop.f32.mrb[0].mxu0
      %v1702 = vadd.f32 %v1413, %v1701
      %v1703 = vpop.f32.mrb[0].mxu0
      %1704 = vmatprep.mubr.bf16.mxu0 %v862
      %1705 = vmatmul.mubr.bf16.gmra.mrb[0].mxu0 %v861
      %v1706 = vpop.f32.mrb[0].mxu0
      %v1707 = vadd.f32 %v1418, %v1706
      %v1708 = vpop.f32.mrb[0].mxu0
      %v1709 = vpop.f32.mrb[0].mxu0
      %v1710 = vadd.f32 %v1421, %v1709
      %v1711 = vpop.f32.mrb[0].mxu0
      %1712 = vmatprep.mubr.bf16.mxu0 %v866
      %1713 = vmatmul.mubr.bf16.gmra.mrb[0].mxu0 %v865
      %v1714 = vpop.f32.mrb[0].mxu0
      %v1715 = vadd.f32 %v1426, %v1714
      %v1716 = vpop.f32.mrb[0].mxu0
      %v1717 = vpop.f32.mrb[0].mxu0
      %v1718 = vadd.f32 %v1429, %v1717
      %v1719 = vpop.f32.mrb[0].mxu0
      %1720 = vmatprep.mubr.bf16.mxu0 %v870
      %1721 = vmatmul.mubr.bf16.gmra.mrb[0].mxu0 %v869
      %v1722 = vpop.f32.mrb[0].mxu0
      %v1723 = vadd.f32 %v1434, %v1722
      %v1724 = vpop.f32.mrb[0].mxu0
      %v1725 = vpop.f32.mrb[0].mxu0
      %v1726 = vadd.f32 %v1437, %v1725
      %v1727 = vpop.f32.mrb[0].mxu0
      %1728 = vmatprep.mubr.bf16.mxu0 %v874
      %1729 = vmatmul.mubr.bf16.gmra.mrb[0].mxu0 %v873
      %v1730 = vpop.f32.mrb[0].mxu0
      %v1731 = vadd.f32 %v1442, %v1730
      %v1732 = vpop.f32.mrb[0].mxu0
      %v1733 = vpop.f32.mrb[0].mxu0
      %v1734 = vadd.f32 %v1445, %v1733
      %v1735 = vpop.f32.mrb[0].mxu0
      %1736 = vmatprep.mubr.bf16.mxu0 %v878
      %1737 = vmatmul.mubr.bf16.gmra.mrb[0].mxu0 %v877
      %v1738 = vpop.f32.mrb[0].mxu0
      %v1739 = vadd.f32 %v1450, %v1738
      %v1740 = vpop.f32.mrb[0].mxu0
      %v1741 = vpop.f32.mrb[0].mxu0
      %v1742 = vadd.f32 %v1453, %v1741
      %v1743 = vpop.f32.mrb[0].mxu0
      %1744 = vmatprep.mubr.bf16.mxu0 %v882
      %1745 = vmatmul.mubr.bf16.gmra.mrb[0].mxu0 %v881
      %v1746 = vpop.f32.mrb[0].mxu0
      %v1747 = vadd.f32 %v1458, %v1746
      %v1748 = vpop.f32.mrb[0].mxu0
      %v1749 = vpop.f32.mrb[0].mxu0
      %v1750 = vadd.f32 %v1461, %v1749
      %v1751 = vpop.f32.mrb[0].mxu0
      %1752 = vmatprep.mubr.bf16.mxu0 %v886
      %1753 = vmatmul.mubr.bf16.gmra.mrb[0].mxu0 %v885
      %v1754 = vpop.f32.mrb[0].mxu0
      %v1755 = vadd.f32 %v1466, %v1754
      %v1756 = vpop.f32.mrb[0].mxu0
      %v1757 = vpop.f32.mrb[0].mxu0
      %v1758 = vadd.f32 %v1469, %v1757
      %v1759 = vpop.f32.mrb[0].mxu0
      %1760 = vmatprep.mubr.bf16.mxu0 %v890
      %1761 = vmatmul.mubr.bf16.gmra.mrb[0].mxu0 %v889
      %v1762 = vpop.f32.mrb[0].mxu0
      %v1763 = vadd.f32 %v1474, %v1762
      %v1764 = vpop.f32.mrb[0].mxu0
      %v1765 = vpop.f32.mrb[0].mxu0
      %v1766 = vadd.f32 %v1477, %v1765
      %v1767 = vpop.f32.mrb[0].mxu0
      %1768 = vmatprep.mubr.bf16.mxu0 %v894
      %1769 = vmatmul.mubr.bf16.gmra.mrb[0].mxu0 %v893
      %v1770 = vpop.f32.mrb[0].mxu0
      %v1771 = vadd.f32 %v1482, %v1770
      %v1772 = vpop.f32.mrb[0].mxu0
      %v1773 = vpop.f32.mrb[0].mxu0
      %v1774 = vadd.f32 %v1485, %v1773
      %v1775 = vpop.f32.mrb[0].mxu0
      %1776 = vmatprep.mubr.bf16.mxu0 %v898
      %1777 = vmatmul.mubr.bf16.gmra.mrb[0].mxu0 %v897
      %v1778 = vpop.f32.mrb[0].mxu0
      %v1779 = vadd.f32 %v1490, %v1778
      %v1780 = vpop.f32.mrb[0].mxu0
      %v1781 = vpop.f32.mrb[0].mxu0
      %v1782 = vadd.f32 %v1493, %v1781
      %v1783 = vpop.f32.mrb[0].mxu0
      %1784 = vmatprep.mubr.bf16.mxu0 %v902
      %1785 = vmatmul.mubr.bf16.gmra.mrb[0].mxu0 %v901
      %v1786 = vpop.f32.mrb[0].mxu0
      %v1787 = vadd.f32 %v1498, %v1786
      %v1788 = vpop.f32.mrb[0].mxu0
      %v1789 = vpop.f32.mrb[0].mxu0
      %v1790 = vadd.f32 %v1501, %v1789
      %v1791 = vpop.f32.mrb[0].mxu0
      %1792 = vmatprep.mubr.bf16.mxu0 %v906
      %1793 = vmatmul.mubr.bf16.gmra.mrb[0].mxu0 %v905
      %v1794 = vpop.f32.mrb[0].mxu0
      %v1795 = vadd.f32 %v1506, %v1794
      %v1796 = vpop.f32.mrb[0].mxu0
      %v1797 = vpop.f32.mrb[0].mxu0
      %v1798 = vadd.f32 %v1509, %v1797
      %v1799 = vpop.f32.mrb[0].mxu0
      %1800 = vmatprep.mubr.bf16.mxu0 %v910
      %1801 = vmatmul.mubr.bf16.gmra.mrb[0].mxu0 %v909
      %v1802 = vpop.f32.mrb[0].mxu0
      %v1803 = vadd.f32 %v1514, %v1802
      %v1804 = vpop.f32.mrb[0].mxu0
      %v1805 = vpop.f32.mrb[0].mxu0
      %v1806 = vadd.f32 %v1517, %v1805
      %v1807 = vpop.f32.mrb[0].mxu0
      %1808 = vdwg.mxu0
      %v1809 = vadd.f32 %v143, %v1555
      %v1810 = vadd.f32 %v144, %v1558
      %v1811 = vadd.f32 %v145, %v1563
      %v1812 = vadd.f32 %v146, %v1566
      %v1813 = vadd.f32 %v147, %v1571
      %v1814 = vadd.f32 %v148, %v1574
      %v1815 = vadd.f32 %v149, %v1579
      %v1816 = vadd.f32 %v150, %v1582
      %v1817 = vadd.f32 %v151, %v1587
      %v1818 = vadd.f32 %v152, %v1590
      %v1819 = vadd.f32 %v153, %v1595
      %v1820 = vadd.f32 %v154, %v1598
      %v1821 = vadd.f32 %v155, %v1603
      %v1822 = vadd.f32 %v156, %v1606
      %v1823 = vadd.f32 %v157, %v1611
      %v1824 = vadd.f32 %v158, %v1614
      %v1825 = vadd.f32 %v159, %v1619
      %v1826 = vadd.f32 %v160, %v1622
      %v1827 = vadd.f32 %v161, %v1627
      %v1828 = vadd.f32 %v162, %v1630
      %v1829 = vadd.f32 %v163, %v1635
      %v1830 = vadd.f32 %v164, %v1638
      %v1831 = vadd.f32 %v165, %v1643
      %v1832 = vadd.f32 %v166, %v1646
      %v1833 = vadd.f32 %v167, %v1651
      %v1834 = vadd.f32 %v168, %v1654
      %v1835 = vadd.f32 %v169, %v1659
      %v1836 = vadd.f32 %v170, %v1662
      %v1837 = vadd.f32 %v171, %v1667
      %v1838 = vadd.f32 %v172, %v1670
      %v1839 = vadd.f32 %v173, %v1675
      %v1840 = vadd.f32 %v174, %v1678
      %v1841 = vadd.f32 %v175, %v1683
      %v1842 = vadd.f32 %v176, %v1686
      %v1843 = vadd.f32 %v177, %v1691
      %v1844 = vadd.f32 %v178, %v1694
      %v1845 = vadd.f32 %v179, %v1699
      %v1846 = vadd.f32 %v180, %v1702
      %v1847 = vadd.f32 %v181, %v1707
      %v1848 = vadd.f32 %v182, %v1710
      %v1849 = vadd.f32 %v183, %v1715
      %v1850 = vadd.f32 %v184, %v1718
      %v1851 = vadd.f32 %v185, %v1723
      %v1852 = vadd.f32 %v186, %v1726
      %v1853 = vadd.f32 %v187, %v1731
      %v1854 = vadd.f32 %v188, %v1734
      %v1855 = vadd.f32 %v189, %v1739
      %v1856 = vadd.f32 %v190, %v1742
      %v1857 = vadd.f32 %v191, %v1747
      %v1858 = vadd.f32 %v192, %v1750
      %v1859 = vadd.f32 %v193, %v1755
      %v1860 = vadd.f32 %v194, %v1758
      %v1861 = vadd.f32 %v195, %v1763
      %v1862 = vadd.f32 %v196, %v1766
      %v1863 = vadd.f32 %v197, %v1771
      %v1864 = vadd.f32 %v198, %v1774
      %v1865 = vadd.f32 %v199, %v1779
      %v1866 = vadd.f32 %v200, %v1782
      %v1867 = vadd.f32 %v201, %v1787
      %v1868 = vadd.f32 %v202, %v1790
      %v1869 = vadd.f32 %v203, %v1795
      %v1870 = vadd.f32 %v204, %v1798
      %v1871 = vadd.f32 %v205, %v1803
      %v1872 = vadd.f32 %v206, %v1806
      %1873 = vst [vmem:[#allocation10] sm:$0xff] %v1809
      %1874 = vst [vmem:[#allocation10 + $0x8] sm:$0xff] %v1810
      %1875 = vst [vmem:[#allocation10 + $0x10] sm:$0xff] %v1811
      %1876 = vst [vmem:[#allocation10 + $0x18] sm:$0xff] %v1812
      %1877 = vst [vmem:[#allocation10 + $0x20] sm:$0xff] %v1813
      %1878 = vst [vmem:[#allocation10 + $0x28] sm:$0xff] %v1814
      %1879 = vst [vmem:[#allocation10 + $0x30] sm:$0xff] %v1815
      %1880 = vst [vmem:[#allocation10 + $0x38] sm:$0xff] %v1816
      %1881 = vst [vmem:[#allocation10 + $0x40] sm:$0xff] %v1817
      %1882 = vst [vmem:[#allocation10 + $0x48] sm:$0xff] %v1818
      %1883 = vst [vmem:[#allocation10 + $0x50] sm:$0xff] %v1819
      %1884 = vst [vmem:[#allocation10 + $0x58] sm:$0xff] %v1820
      %1885 = vst [vmem:[#allocation10 + $0x60] sm:$0xff] %v1821
      %1886 = vst [vmem:[#allocation10 + $0x68] sm:$0xff] %v1822
      %1887 = vst [vmem:[#allocation10 + $0x70] sm:$0xff] %v1823
      %1888 = vst [vmem:[#allocation10 + $0x78] sm:$0xff] %v1824
      %1889 = vst [vmem:[#allocation10 + $0x80] sm:$0xff] %v1825
      %1890 = vst [vmem:[#allocation10 + $0x88] sm:$0xff] %v1826
      %1891 = vst [vmem:[#allocation10 + $0x90] sm:$0xff] %v1827
      %1892 = vst [vmem:[#allocation10 + $0x98] sm:$0xff] %v1828
      %1893 = vst [vmem:[#allocation10 + $0xa0] sm:$0xff] %v1829
      %1894 = vst [vmem:[#allocation10 + $0xa8] sm:$0xff] %v1830
      %1895 = vst [vmem:[#allocation10 + $0xb0] sm:$0xff] %v1831
      %1896 = vst [vmem:[#allocation10 + $0xb8] sm:$0xff] %v1832
      %1897 = vst [vmem:[#allocation10 + $0xc0] sm:$0xff] %v1833
      %1898 = vst [vmem:[#allocation10 + $0xc8] sm:$0xff] %v1834
      %1899 = vst [vmem:[#allocation10 + $0xd0] sm:$0xff] %v1835
      %1900 = vst [vmem:[#allocation10 + $0xd8] sm:$0xff] %v1836
      %1901 = vst [vmem:[#allocation10 + $0xe0] sm:$0xff] %v1837
      %1902 = vst [vmem:[#allocation10 + $0xe8] sm:$0xff] %v1838
      %1903 = vst [vmem:[#allocation10 + $0xf0] sm:$0xff] %v1839
      %1904 = vst [vmem:[#allocation10 + $0xf8] sm:$0xff] %v1840
      %1905 = vst [vmem:[#allocation10 + $0x100] sm:$0xff] %v1841
      %1906 = vst [vmem:[#allocation10 + $0x108] sm:$0xff] %v1842
      %1907 = vst [vmem:[#allocation10 + $0x110] sm:$0xff] %v1843
      %1908 = vst [vmem:[#allocation10 + $0x118] sm:$0xff] %v1844
      %1909 = vst [vmem:[#allocation10 + $0x120] sm:$0xff] %v1845
      %1910 = vst [vmem:[#allocation10 + $0x128] sm:$0xff] %v1846
      %1911 = vst [vmem:[#allocation10 + $0x130] sm:$0xff] %v1847
      %1912 = vst [vmem:[#allocation10 + $0x138] sm:$0xff] %v1848
      %1913 = vst [vmem:[#allocation10 + $0x140] sm:$0xff] %v1849
      %1914 = vst [vmem:[#allocation10 + $0x148] sm:$0xff] %v1850
      %1915 = vst [vmem:[#allocation10 + $0x150] sm:$0xff] %v1851
      %1916 = vst [vmem:[#allocation10 + $0x158] sm:$0xff] %v1852
      %1917 = vst [vmem:[#allocation10 + $0x160] sm:$0xff] %v1853
      %1918 = vst [vmem:[#allocation10 + $0x168] sm:$0xff] %v1854
      %1919 = vst [vmem:[#allocation10 + $0x170] sm:$0xff] %v1855
      %1920 = vst [vmem:[#allocation10 + $0x178] sm:$0xff] %v1856
      %1921 = vst [vmem:[#allocation10 + $0x180] sm:$0xff] %v1857
      %1922 = vst [vmem:[#allocation10 + $0x188] sm:$0xff] %v1858
      %1923 = vst [vmem:[#allocation10 + $0x190] sm:$0xff] %v1859
      %1924 = vst [vmem:[#allocation10 + $0x198] sm:$0xff] %v1860
      %1925 = vst [vmem:[#allocation10 + $0x1a0] sm:$0xff] %v1861
      %1926 = vst [vmem:[#allocation10 + $0x1a8] sm:$0xff] %v1862
      %1927 = vst [vmem:[#allocation10 + $0x1b0] sm:$0xff] %v1863
      %1928 = vst [vmem:[#allocation10 + $0x1b8] sm:$0xff] %v1864
      %1929 = vst [vmem:[#allocation10 + $0x1c0] sm:$0xff] %v1865
      %1930 = vst [vmem:[#allocation10 + $0x1c8] sm:$0xff] %v1866
      %1931 = vst [vmem:[#allocation10 + $0x1d0] sm:$0xff] %v1867
      %1932 = vst [vmem:[#allocation10 + $0x1d8] sm:$0xff] %v1868
      %1933 = vst [vmem:[#allocation10 + $0x1e0] sm:$0xff] %v1869
      %1934 = vst [vmem:[#allocation10 + $0x1e8] sm:$0xff] %v1870
      %1935 = vst [vmem:[#allocation10 + $0x1f0] sm:$0xff] %v1871
      %1936 = vst [vmem:[#allocation10 + $0x1f8] sm:$0xff] %v1872
    $region37: #{tpu_custom_call.1} parent=1 // pred_fallthru
      _
    // Predicated region
    $region38: #{tpu_custom_call.1} parent=1 // pred_check
      %p1937 = pneg %p70
    $region39: #{tpu_custom_call.1} parent=1 // pred_check_branch
      %1939 = sbr.rel (%p1937) target = $region41
    $region40: #{tpu_custom_call.1} parent=1 // pred_region
      %v1940 = vld [vmem:[#allocation10] sm:$0xff]
      %v1941 = vld [vmem:[#allocation10 + $0x8] sm:$0xff]
      %v1942 = vld [vmem:[#allocation10 + $0x10] sm:$0xff]
      %v1943 = vld [vmem:[#allocation10 + $0x18] sm:$0xff]
      %v1944 = vld [vmem:[#allocation10 + $0x20] sm:$0xff]
      %v1945 = vld [vmem:[#allocation10 + $0x28] sm:$0xff]
      %v1946 = vld [vmem:[#allocation10 + $0x30] sm:$0xff]
      %v1947 = vld [vmem:[#allocation10 + $0x38] sm:$0xff]
      %v1948 = vld [vmem:[#allocation10 + $0x40] sm:$0xff]
      %v1949 = vld [vmem:[#allocation10 + $0x48] sm:$0xff]
      %v1950 = vld [vmem:[#allocation10 + $0x50] sm:$0xff]
      %v1951 = vld [vmem:[#allocation10 + $0x58] sm:$0xff]
      %v1952 = vld [vmem:[#allocation10 + $0x60] sm:$0xff]
      %v1953 = vld [vmem:[#allocation10 + $0x68] sm:$0xff]
      %v1954 = vld [vmem:[#allocation10 + $0x70] sm:$0xff]
      %v1955 = vld [vmem:[#allocation10 + $0x78] sm:$0xff]
      %v1956 = vld [vmem:[#allocation10 + $0x80] sm:$0xff]
      %v1957 = vld [vmem:[#allocation10 + $0x88] sm:$0xff]
      %v1958 = vld [vmem:[#allocation10 + $0x90] sm:$0xff]
      %v1959 = vld [vmem:[#allocation10 + $0x98] sm:$0xff]
      %v1960 = vld [vmem:[#allocation10 + $0xa0] sm:$0xff]
      %v1961 = vld [vmem:[#allocation10 + $0xa8] sm:$0xff]
      %v1962 = vld [vmem:[#allocation10 + $0xb0] sm:$0xff]
      %v1963 = vld [vmem:[#allocation10 + $0xb8] sm:$0xff]
      %v1964 = vld [vmem:[#allocation10 + $0xc0] sm:$0xff]
      %v1965 = vld [vmem:[#allocation10 + $0xc8] sm:$0xff]
      %v1966 = vld [vmem:[#allocation10 + $0xd0] sm:$0xff]
      %v1967 = vld [vmem:[#allocation10 + $0xd8] sm:$0xff]
      %v1968 = vld [vmem:[#allocation10 + $0xe0] sm:$0xff]
      %v1969 = vld [vmem:[#allocation10 + $0xe8] sm:$0xff]
      %v1970 = vld [vmem:[#allocation10 + $0xf0] sm:$0xff]
      %v1971 = vld [vmem:[#allocation10 + $0xf8] sm:$0xff]
      %v1972 = vld [vmem:[#allocation10 + $0x100] sm:$0xff]
      %v1973 = vld [vmem:[#allocation10 + $0x108] sm:$0xff]
      %v1974 = vld [vmem:[#allocation10 + $0x110] sm:$0xff]
      %v1975 = vld [vmem:[#allocation10 + $0x118] sm:$0xff]
      %v1976 = vld [vmem:[#allocation10 + $0x120] sm:$0xff]
      %v1977 = vld [vmem:[#allocation10 + $0x128] sm:$0xff]
      %v1978 = vld [vmem:[#allocation10 + $0x130] sm:$0xff]
      %v1979 = vld [vmem:[#allocation10 + $0x138] sm:$0xff]
      %v1980 = vld [vmem:[#allocation10 + $0x140] sm:$0xff]
      %v1981 = vld [vmem:[#allocation10 + $0x148] sm:$0xff]
      %v1982 = vld [vmem:[#allocation10 + $0x150] sm:$0xff]
      %v1983 = vld [vmem:[#allocation10 + $0x158] sm:$0xff]
      %v1984 = vld [vmem:[#allocation10 + $0x160] sm:$0xff]
      %v1985 = vld [vmem:[#allocation10 + $0x168] sm:$0xff]
      %v1986 = vld [vmem:[#allocation10 + $0x170] sm:$0xff]
      %v1987 = vld [vmem:[#allocation10 + $0x178] sm:$0xff]
      %v1988 = vld [vmem:[#allocation10 + $0x180] sm:$0xff]
      %v1989 = vld [vmem:[#allocation10 + $0x188] sm:$0xff]
      %v1990 = vld [vmem:[#allocation10 + $0x190] sm:$0xff]
      %v1991 = vld [vmem:[#allocation10 + $0x198] sm:$0xff]
      %v1992 = vld [vmem:[#allocation10 + $0x1a0] sm:$0xff]
      %v1993 = vld [vmem:[#allocation10 + $0x1a8] sm:$0xff]
      %v1994 = vld [vmem:[#allocation10 + $0x1b0] sm:$0xff]
      %v1995 = vld [vmem:[#allocation10 + $0x1b8] sm:$0xff]
      %v1996 = vld [vmem:[#allocation10 + $0x1c0] sm:$0xff]
      %v1997 = vld [vmem:[#allocation10 + $0x1c8] sm:$0xff]
      %v1998 = vld [vmem:[#allocation10 + $0x1d0] sm:$0xff]
      %v1999 = vld [vmem:[#allocation10 + $0x1d8] sm:$0xff]
      %v2000 = vld [vmem:[#allocation10 + $0x1e0] sm:$0xff]
      %v2001 = vld [vmem:[#allocation10 + $0x1e8] sm:$0xff]
      %v2002 = vld [vmem:[#allocation10 + $0x1f0] sm:$0xff]
      %v2003 = vld [vmem:[#allocation10 + $0x1f8] sm:$0xff]
      %v2004 = vld [vmem:[%s5] sm:$0x1]
      %v2006 = vlaneseq
      %v2007 = vshrl.u32 %v2006, 7
      %v2008 = vsub.s32 0, %v2007
      %v2009 = vrot.slane %v2004, %v2008
      %v2011 = vadd.f32 %v1940, %v2009
      %v2012 = vadd.f32 %v1941, %v2009
      %v2013 = vadd.f32 %v1942, %v2009
      %v2014 = vadd.f32 %v1943, %v2009
      %v2015 = vadd.f32 %v1944, %v2009
      %v2016 = vadd.f32 %v1945, %v2009
      %v2017 = vadd.f32 %v1946, %v2009
      %v2018 = vadd.f32 %v1947, %v2009
      %v2019 = vadd.f32 %v1948, %v2009
      %v2020 = vadd.f32 %v1949, %v2009
      %v2021 = vadd.f32 %v1950, %v2009
      %v2022 = vadd.f32 %v1951, %v2009
      %v2023 = vadd.f32 %v1952, %v2009
      %v2024 = vadd.f32 %v1953, %v2009
      %v2025 = vadd.f32 %v1954, %v2009
      %v2026 = vadd.f32 %v1955, %v2009
      %v2027 = vadd.f32 %v1956, %v2009
      %v2028 = vadd.f32 %v1957, %v2009
      %v2029 = vadd.f32 %v1958, %v2009
      %v2030 = vadd.f32 %v1959, %v2009
      %v2031 = vadd.f32 %v1960, %v2009
      %v2032 = vadd.f32 %v1961, %v2009
      %v2033 = vadd.f32 %v1962, %v2009
      %v2034 = vadd.f32 %v1963, %v2009
      %v2035 = vadd.f32 %v1964, %v2009
      %v2036 = vadd.f32 %v1965, %v2009
      %v2037 = vadd.f32 %v1966, %v2009
      %v2038 = vadd.f32 %v1967, %v2009
      %v2039 = vadd.f32 %v1968, %v2009
      %v2040 = vadd.f32 %v1969, %v2009
      %v2041 = vadd.f32 %v1970, %v2009
      %v2042 = vadd.f32 %v1971, %v2009
      %v2043 = vadd.f32 %v1972, %v2009
      %v2044 = vadd.f32 %v1973, %v2009
      %v2045 = vadd.f32 %v1974, %v2009
      %v2046 = vadd.f32 %v1975, %v2009
      %v2047 = vadd.f32 %v1976, %v2009
      %v2048 = vadd.f32 %v1977, %v2009
      %v2049 = vadd.f32 %v1978, %v2009
      %v2050 = vadd.f32 %v1979, %v2009
      %v2051 = vadd.f32 %v1980, %v2009
      %v2052 = vadd.f32 %v1981, %v2009
      %v2053 = vadd.f32 %v1982, %v2009
      %v2054 = vadd.f32 %v1983, %v2009
      %v2055 = vadd.f32 %v1984, %v2009
      %v2056 = vadd.f32 %v1985, %v2009
      %v2057 = vadd.f32 %v1986, %v2009
      %v2058 = vadd.f32 %v1987, %v2009
      %v2059 = vadd.f32 %v1988, %v2009
      %v2060 = vadd.f32 %v1989, %v2009
      %v2061 = vadd.f32 %v1990, %v2009
      %v2062 = vadd.f32 %v1991, %v2009
      %v2063 = vadd.f32 %v1992, %v2009
      %v2064 = vadd.f32 %v1993, %v2009
      %v2065 = vadd.f32 %v1994, %v2009
      %v2066 = vadd.f32 %v1995, %v2009
      %v2067 = vadd.f32 %v1996, %v2009
      %v2068 = vadd.f32 %v1997, %v2009
      %v2069 = vadd.f32 %v1998, %v2009
      %v2070 = vadd.f32 %v1999, %v2009
      %v2071 = vadd.f32 %v2000, %v2009
      %v2072 = vadd.f32 %v2001, %v2009
      %v2073 = vadd.f32 %v2002, %v2009
      %v2074 = vadd.f32 %v2003, %v2009
      %v2075 = vld [vmem:[%s6] sm:$0xff]
      %v2076 = vld [vmem:[%s6 + $0x8] sm:$0xff]
      %v2077 = vld [vmem:[%s6 + $0x10] sm:$0xff]
      %v2078 = vld [vmem:[%s6 + $0x18] sm:$0xff]
      %v2079 = vld [vmem:[%s6 + $0x20] sm:$0xff]
      %v2080 = vld [vmem:[%s6 + $0x28] sm:$0xff]
      %v2081 = vld [vmem:[%s6 + $0x30] sm:$0xff]
      %v2082 = vld [vmem:[%s6 + $0x38] sm:$0xff]
      %v2083 = vld [vmem:[%s6 + $0x40] sm:$0xff]
      %v2084 = vld [vmem:[%s6 + $0x48] sm:$0xff]
      %v2085 = vld [vmem:[%s6 + $0x50] sm:$0xff]
      %v2086 = vld [vmem:[%s6 + $0x58] sm:$0xff]
      %v2087 = vld [vmem:[%s6 + $0x60] sm:$0xff]
      %v2088 = vld [vmem:[%s6 + $0x68] sm:$0xff]
      %v2089 = vld [vmem:[%s6 + $0x70] sm:$0xff]
      %v2090 = vld [vmem:[%s6 + $0x78] sm:$0xff]
      %v2091 = vld [vmem:[%s6 + $0x80] sm:$0xff]
      %v2092 = vld [vmem:[%s6 + $0x88] sm:$0xff]
      %v2093 = vld [vmem:[%s6 + $0x90] sm:$0xff]
      %v2094 = vld [vmem:[%s6 + $0x98] sm:$0xff]
      %v2095 = vld [vmem:[%s6 + $0xa0] sm:$0xff]
      %v2096 = vld [vmem:[%s6 + $0xa8] sm:$0xff]
      %v2097 = vld [vmem:[%s6 + $0xb0] sm:$0xff]
      %v2098 = vld [vmem:[%s6 + $0xb8] sm:$0xff]
      %v2099 = vld [vmem:[%s6 + $0xc0] sm:$0xff]
      %v2100 = vld [vmem:[%s6 + $0xc8] sm:$0xff]
      %v2101 = vld [vmem:[%s6 + $0xd0] sm:$0xff]
      %v2102 = vld [vmem:[%s6 + $0xd8] sm:$0xff]
      %v2103 = vld [vmem:[%s6 + $0xe0] sm:$0xff]
      %v2104 = vld [vmem:[%s6 + $0xe8] sm:$0xff]
      %v2105 = vld [vmem:[%s6 + $0xf0] sm:$0xff]
      %v2106 = vld [vmem:[%s6 + $0xf8] sm:$0xff]
      %v2107 = vld [vmem:[%s6 + $0x100] sm:$0xff]
      %v2108 = vld [vmem:[%s6 + $0x108] sm:$0xff]
      %v2109 = vld [vmem:[%s6 + $0x110] sm:$0xff]
      %v2110 = vld [vmem:[%s6 + $0x118] sm:$0xff]
      %v2111 = vld [vmem:[%s6 + $0x120] sm:$0xff]
      %v2112 = vld [vmem:[%s6 + $0x128] sm:$0xff]
      %v2113 = vld [vmem:[%s6 + $0x130] sm:$0xff]
      %v2114 = vld [vmem:[%s6 + $0x138] sm:$0xff]
      %v2115 = vld [vmem:[%s6 + $0x140] sm:$0xff]
      %v2116 = vld [vmem:[%s6 + $0x148] sm:$0xff]
      %v2117 = vld [vmem:[%s6 + $0x150] sm:$0xff]
      %v2118 = vld [vmem:[%s6 + $0x158] sm:$0xff]
      %v2119 = vld [vmem:[%s6 + $0x160] sm:$0xff]
      %v2120 = vld [vmem:[%s6 + $0x168] sm:$0xff]
      %v2121 = vld [vmem:[%s6 + $0x170] sm:$0xff]
      %v2122 = vld [vmem:[%s6 + $0x178] sm:$0xff]
      %v2123 = vld [vmem:[%s6 + $0x180] sm:$0xff]
      %v2124 = vld [vmem:[%s6 + $0x188] sm:$0xff]
      %v2125 = vld [vmem:[%s6 + $0x190] sm:$0xff]
      %v2126 = vld [vmem:[%s6 + $0x198] sm:$0xff]
      %v2127 = vld [vmem:[%s6 + $0x1a0] sm:$0xff]
      %v2128 = vld [vmem:[%s6 + $0x1a8] sm:$0xff]
      %v2129 = vld [vmem:[%s6 + $0x1b0] sm:$0xff]
      %v2130 = vld [vmem:[%s6 + $0x1b8] sm:$0xff]
      %v2131 = vld [vmem:[%s6 + $0x1c0] sm:$0xff]
      %v2132 = vld [vmem:[%s6 + $0x1c8] sm:$0xff]
      %v2133 = vld [vmem:[%s6 + $0x1d0] sm:$0xff]
      %v2134 = vld [vmem:[%s6 + $0x1d8] sm:$0xff]
      %v2135 = vld [vmem:[%s6 + $0x1e0] sm:$0xff]
      %v2136 = vld [vmem:[%s6 + $0x1e8] sm:$0xff]
      %v2137 = vld [vmem:[%s6 + $0x1f0] sm:$0xff]
      %v2138 = vld [vmem:[%s6 + $0x1f8] sm:$0xff]
      %vm2139 = vcmp.gt.f32.partialorder %v2075, 0.0
      %vm2140 = vcmp.gt.f32.partialorder %v2076, 0.0
      %vm2141 = vcmp.gt.f32.partialorder %v2077, 0.0
      %vm2142 = vcmp.gt.f32.partialorder %v2078, 0.0
      %vm2143 = vcmp.gt.f32.partialorder %v2079, 0.0
      %vm2144 = vcmp.gt.f32.partialorder %v2080, 0.0
      %vm2145 = vcmp.gt.f32.partialorder %v2081, 0.0
      %vm2146 = vcmp.gt.f32.partialorder %v2082, 0.0
      %vm2147 = vcmp.gt.f32.partialorder %v2083, 0.0
      %vm2148 = vcmp.gt.f32.partialorder %v2084, 0.0
      %vm2149 = vcmp.gt.f32.partialorder %v2085, 0.0
      %vm2150 = vcmp.gt.f32.partialorder %v2086, 0.0
      %vm2151 = vcmp.gt.f32.partialorder %v2087, 0.0
      %vm2152 = vcmp.gt.f32.partialorder %v2088, 0.0
      %vm2153 = vcmp.gt.f32.partialorder %v2089, 0.0
      %vm2154 = vcmp.gt.f32.partialorder %v2090, 0.0
      %vm2155 = vcmp.gt.f32.partialorder %v2091, 0.0
      %vm2156 = vcmp.gt.f32.partialorder %v2092, 0.0
      %vm2157 = vcmp.gt.f32.partialorder %v2093, 0.0
      %vm2158 = vcmp.gt.f32.partialorder %v2094, 0.0
      %vm2159 = vcmp.gt.f32.partialorder %v2095, 0.0
      %vm2160 = vcmp.gt.f32.partialorder %v2096, 0.0
      %vm2161 = vcmp.gt.f32.partialorder %v2097, 0.0
      %vm2162 = vcmp.gt.f32.partialorder %v2098, 0.0
      %vm2163 = vcmp.gt.f32.partialorder %v2099, 0.0
      %vm2164 = vcmp.gt.f32.partialorder %v2100, 0.0
      %vm2165 = vcmp.gt.f32.partialorder %v2101, 0.0
      %vm2166 = vcmp.gt.f32.partialorder %v2102, 0.0
      %vm2167 = vcmp.gt.f32.partialorder %v2103, 0.0
      %vm2168 = vcmp.gt.f32.partialorder %v2104, 0.0
      %vm2169 = vcmp.gt.f32.partialorder %v2105, 0.0
      %vm2170 = vcmp.gt.f32.partialorder %v2106, 0.0
      %vm2171 = vcmp.gt.f32.partialorder %v2107, 0.0
      %vm2172 = vcmp.gt.f32.partialorder %v2108, 0.0
      %vm2173 = vcmp.gt.f32.partialorder %v2109, 0.0
      %vm2174 = vcmp.gt.f32.partialorder %v2110, 0.0
      %vm2175 = vcmp.gt.f32.partialorder %v2111, 0.0
      %vm2176 = vcmp.gt.f32.partialorder %v2112, 0.0
      %vm2177 = vcmp.gt.f32.partialorder %v2113, 0.0
      %vm2178 = vcmp.gt.f32.partialorder %v2114, 0.0
      %vm2179 = vcmp.gt.f32.partialorder %v2115, 0.0
      %vm2180 = vcmp.gt.f32.partialorder %v2116, 0.0
      %vm2181 = vcmp.gt.f32.partialorder %v2117, 0.0
      %vm2182 = vcmp.gt.f32.partialorder %v2118, 0.0
      %vm2183 = vcmp.gt.f32.partialorder %v2119, 0.0
      %vm2184 = vcmp.gt.f32.partialorder %v2120, 0.0
      %vm2185 = vcmp.gt.f32.partialorder %v2121, 0.0
      %vm2186 = vcmp.gt.f32.partialorder %v2122, 0.0
      %vm2187 = vcmp.gt.f32.partialorder %v2123, 0.0
      %vm2188 = vcmp.gt.f32.partialorder %v2124, 0.0
      %vm2189 = vcmp.gt.f32.partialorder %v2125, 0.0
      %vm2190 = vcmp.gt.f32.partialorder %v2126, 0.0
      %vm2191 = vcmp.gt.f32.partialorder %v2127, 0.0
      %vm2192 = vcmp.gt.f32.partialorder %v2128, 0.0
      %vm2193 = vcmp.gt.f32.partialorder %v2129, 0.0
      %vm2194 = vcmp.gt.f32.partialorder %v2130, 0.0
      %vm2195 = vcmp.gt.f32.partialorder %v2131, 0.0
      %vm2196 = vcmp.gt.f32.partialorder %v2132, 0.0
      %vm2197 = vcmp.gt.f32.partialorder %v2133, 0.0
      %vm2198 = vcmp.gt.f32.partialorder %v2134, 0.0
      %vm2199 = vcmp.gt.f32.partialorder %v2135, 0.0
      %vm2200 = vcmp.gt.f32.partialorder %v2136, 0.0
      %vm2201 = vcmp.gt.f32.partialorder %v2137, 0.0
      %vm2202 = vcmp.gt.f32.partialorder %v2138, 0.0
      %v2203 = vld [vmem:[%s4] sm:$0xff]
      %v2204 = vld [vmem:[%s4 + $0x8] sm:$0xff]
      %v2205 = vld [vmem:[%s4 + $0x10] sm:$0xff]
      %v2206 = vld [vmem:[%s4 + $0x18] sm:$0xff]
      %v2207 = vld [vmem:[%s4 + $0x20] sm:$0xff]
      %v2208 = vld [vmem:[%s4 + $0x28] sm:$0xff]
      %v2209 = vld [vmem:[%s4 + $0x30] sm:$0xff]
      %v2210 = vld [vmem:[%s4 + $0x38] sm:$0xff]
      %v2211 = vld [vmem:[%s4 + $0x40] sm:$0xff]
      %v2212 = vld [vmem:[%s4 + $0x48] sm:$0xff]
      %v2213 = vld [vmem:[%s4 + $0x50] sm:$0xff]
      %v2214 = vld [vmem:[%s4 + $0x58] sm:$0xff]
      %v2215 = vld [vmem:[%s4 + $0x60] sm:$0xff]
      %v2216 = vld [vmem:[%s4 + $0x68] sm:$0xff]
      %v2217 = vld [vmem:[%s4 + $0x70] sm:$0xff]
      %v2218 = vld [vmem:[%s4 + $0x78] sm:$0xff]
      %v2219 = vld [vmem:[%s4 + $0x80] sm:$0xff]
      %v2220 = vld [vmem:[%s4 + $0x88] sm:$0xff]
      %v2221 = vld [vmem:[%s4 + $0x90] sm:$0xff]
      %v2222 = vld [vmem:[%s4 + $0x98] sm:$0xff]
      %v2223 = vld [vmem:[%s4 + $0xa0] sm:$0xff]
      %v2224 = vld [vmem:[%s4 + $0xa8] sm:$0xff]
      %v2225 = vld [vmem:[%s4 + $0xb0] sm:$0xff]
      %v2226 = vld [vmem:[%s4 + $0xb8] sm:$0xff]
      %v2227 = vld [vmem:[%s4 + $0xc0] sm:$0xff]
      %v2228 = vld [vmem:[%s4 + $0xc8] sm:$0xff]
      %v2229 = vld [vmem:[%s4 + $0xd0] sm:$0xff]
      %v2230 = vld [vmem:[%s4 + $0xd8] sm:$0xff]
      %v2231 = vld [vmem:[%s4 + $0xe0] sm:$0xff]
      %v2232 = vld [vmem:[%s4 + $0xe8] sm:$0xff]
      %v2233 = vld [vmem:[%s4 + $0xf0] sm:$0xff]
      %v2234 = vld [vmem:[%s4 + $0xf8] sm:$0xff]
      %v2235 = vld [vmem:[%s4 + $0x100] sm:$0xff]
      %v2236 = vld [vmem:[%s4 + $0x108] sm:$0xff]
      %v2237 = vld [vmem:[%s4 + $0x110] sm:$0xff]
      %v2238 = vld [vmem:[%s4 + $0x118] sm:$0xff]
      %v2239 = vld [vmem:[%s4 + $0x120] sm:$0xff]
      %v2240 = vld [vmem:[%s4 + $0x128] sm:$0xff]
      %v2241 = vld [vmem:[%s4 + $0x130] sm:$0xff]
      %v2242 = vld [vmem:[%s4 + $0x138] sm:$0xff]
      %v2243 = vld [vmem:[%s4 + $0x140] sm:$0xff]
      %v2244 = vld [vmem:[%s4 + $0x148] sm:$0xff]
      %v2245 = vld [vmem:[%s4 + $0x150] sm:$0xff]
      %v2246 = vld [vmem:[%s4 + $0x158] sm:$0xff]
      %v2247 = vld [vmem:[%s4 + $0x160] sm:$0xff]
      %v2248 = vld [vmem:[%s4 + $0x168] sm:$0xff]
      %v2249 = vld [vmem:[%s4 + $0x170] sm:$0xff]
      %v2250 = vld [vmem:[%s4 + $0x178] sm:$0xff]
      %v2251 = vld [vmem:[%s4 + $0x180] sm:$0xff]
      %v2252 = vld [vmem:[%s4 + $0x188] sm:$0xff]
      %v2253 = vld [vmem:[%s4 + $0x190] sm:$0xff]
      %v2254 = vld [vmem:[%s4 + $0x198] sm:$0xff]
      %v2255 = vld [vmem:[%s4 + $0x1a0] sm:$0xff]
      %v2256 = vld [vmem:[%s4 + $0x1a8] sm:$0xff]
      %v2257 = vld [vmem:[%s4 + $0x1b0] sm:$0xff]
      %v2258 = vld [vmem:[%s4 + $0x1b8] sm:$0xff]
      %v2259 = vld [vmem:[%s4 + $0x1c0] sm:$0xff]
      %v2260 = vld [vmem:[%s4 + $0x1c8] sm:$0xff]
      %v2261 = vld [vmem:[%s4 + $0x1d0] sm:$0xff]
      %v2262 = vld [vmem:[%s4 + $0x1d8] sm:$0xff]
      %v2263 = vld [vmem:[%s4 + $0x1e0] sm:$0xff]
      %v2264 = vld [vmem:[%s4 + $0x1e8] sm:$0xff]
      %v2265 = vld [vmem:[%s4 + $0x1f0] sm:$0xff]
      %v2266 = vld [vmem:[%s4 + $0x1f8] sm:$0xff]
      %v2267 = vsel %vm2139, 1, 0
      %v2268 = vsel %vm2140, 1, 0
      %v2269 = vsel %vm2141, 1, 0
      %v2270 = vsel %vm2142, 1, 0
      %v2271 = vsel %vm2143, 1, 0
      %v2272 = vsel %vm2144, 1, 0
      %v2273 = vsel %vm2145, 1, 0
      %v2274 = vsel %vm2146, 1, 0
      %v2275 = vsel %vm2147, 1, 0
      %v2276 = vsel %vm2148, 1, 0
      %v2277 = vsel %vm2149, 1, 0
      %v2278 = vsel %vm2150, 1, 0
      %v2279 = vsel %vm2151, 1, 0
      %v2280 = vsel %vm2152, 1, 0
      %v2281 = vsel %vm2153, 1, 0
      %v2282 = vsel %vm2154, 1, 0
      %v2283 = vsel %vm2155, 1, 0
      %v2284 = vsel %vm2156, 1, 0
      %v2285 = vsel %vm2157, 1, 0
      %v2286 = vsel %vm2158, 1, 0
      %v2287 = vsel %vm2159, 1, 0
      %v2288 = vsel %vm2160, 1, 0
      %v2289 = vsel %vm2161, 1, 0
      %v2290 = vsel %vm2162, 1, 0
      %v2291 = vsel %vm2163, 1, 0
      %v2292 = vsel %vm2164, 1, 0
      %v2293 = vsel %vm2165, 1, 0
      %v2294 = vsel %vm2166, 1, 0
      %v2295 = vsel %vm2167, 1, 0
      %v2296 = vsel %vm2168, 1, 0
      %v2297 = vsel %vm2169, 1, 0
      %v2298 = vsel %vm2170, 1, 0
      %v2299 = vsel %vm2171, 1, 0
      %v2300 = vsel %vm2172, 1, 0
      %v2301 = vsel %vm2173, 1, 0
      %v2302 = vsel %vm2174, 1, 0
      %v2303 = vsel %vm2175, 1, 0
      %v2304 = vsel %vm2176, 1, 0
      %v2305 = vsel %vm2177, 1, 0
      %v2306 = vsel %vm2178, 1, 0
      %v2307 = vsel %vm2179, 1, 0
      %v2308 = vsel %vm2180, 1, 0
      %v2309 = vsel %vm2181, 1, 0
      %v2310 = vsel %vm2182, 1, 0
      %v2311 = vsel %vm2183, 1, 0
      %v2312 = vsel %vm2184, 1, 0
      %v2313 = vsel %vm2185, 1, 0
      %v2314 = vsel %vm2186, 1, 0
      %v2315 = vsel %vm2187, 1, 0
      %v2316 = vsel %vm2188, 1, 0
      %v2317 = vsel %vm2189, 1, 0
      %v2318 = vsel %vm2190, 1, 0
      %v2319 = vsel %vm2191, 1, 0
      %v2320 = vsel %vm2192, 1, 0
      %v2321 = vsel %vm2193, 1, 0
      %v2322 = vsel %vm2194, 1, 0
      %v2323 = vsel %vm2195, 1, 0
      %v2324 = vsel %vm2196, 1, 0
      %v2325 = vsel %vm2197, 1, 0
      %v2326 = vsel %vm2198, 1, 0
      %v2327 = vsel %vm2199, 1, 0
      %v2328 = vsel %vm2200, 1, 0
      %v2329 = vsel %vm2201, 1, 0
      %v2330 = vsel %vm2202, 1, 0
      %2331 = vset.pattern.permute.xlu0 0
      %2332 = vperm.xlu0 %2331, %v2267
      %v2333 = vpop.permute.xlu0 %2332
      %2334 = vset.pattern.permute.xlu0 0
      %2335 = vperm.xlu0 %2334, %v2268
      %v2336 = vpop.permute.xlu0 %2335
      %2337 = vset.pattern.permute.xlu0 0
      %2338 = vperm.xlu0 %2337, %v2269
      %v2339 = vpop.permute.xlu0 %2338
      %2340 = vset.pattern.permute.xlu0 0
      %2341 = vperm.xlu0 %2340, %v2270
      %v2342 = vpop.permute.xlu0 %2341
      %2343 = vset.pattern.permute.xlu0 0
      %2344 = vperm.xlu0 %2343, %v2271
      %v2345 = vpop.permute.xlu0 %2344
      %2346 = vset.pattern.permute.xlu0 0
      %2347 = vperm.xlu0 %2346, %v2272
      %v2348 = vpop.permute.xlu0 %2347
      %2349 = vset.pattern.permute.xlu0 0
      %2350 = vperm.xlu0 %2349, %v2273
      %v2351 = vpop.permute.xlu0 %2350
      %2352 = vset.pattern.permute.xlu0 0
      %2353 = vperm.xlu0 %2352, %v2274
      %v2354 = vpop.permute.xlu0 %2353
      %2355 = vset.pattern.permute.xlu0 0
      %2356 = vperm.xlu0 %2355, %v2275
      %v2357 = vpop.permute.xlu0 %2356
      %2358 = vset.pattern.permute.xlu0 0
      %2359 = vperm.xlu0 %2358, %v2276
      %v2360 = vpop.permute.xlu0 %2359
      %2361 = vset.pattern.permute.xlu0 0
      %2362 = vperm.xlu0 %2361, %v2277
      %v2363 = vpop.permute.xlu0 %2362
      %2364 = vset.pattern.permute.xlu0 0
      %2365 = vperm.xlu0 %2364, %v2278
      %v2366 = vpop.permute.xlu0 %2365
      %2367 = vset.pattern.permute.xlu0 0
      %2368 = vperm.xlu0 %2367, %v2279
      %v2369 = vpop.permute.xlu0 %2368
      %2370 = vset.pattern.permute.xlu0 0
      %2371 = vperm.xlu0 %2370, %v2280
      %v2372 = vpop.permute.xlu0 %2371
      %2373 = vset.pattern.permute.xlu0 0
      %2374 = vperm.xlu0 %2373, %v2281
      %v2375 = vpop.permute.xlu0 %2374
      %2376 = vset.pattern.permute.xlu0 0
      %2377 = vperm.xlu0 %2376, %v2282
      %v2378 = vpop.permute.xlu0 %2377
      %2379 = vset.pattern.permute.xlu0 0
      %2380 = vperm.xlu0 %2379, %v2283
      %v2381 = vpop.permute.xlu0 %2380
      %2382 = vset.pattern.permute.xlu0 0
      %2383 = vperm.xlu0 %2382, %v2284
      %v2384 = vpop.permute.xlu0 %2383
      %2385 = vset.pattern.permute.xlu0 0
      %2386 = vperm.xlu0 %2385, %v2285
      %v2387 = vpop.permute.xlu0 %2386
      %2388 = vset.pattern.permute.xlu0 0
      %2389 = vperm.xlu0 %2388, %v2286
      %v2390 = vpop.permute.xlu0 %2389
      %2391 = vset.pattern.permute.xlu0 0
      %2392 = vperm.xlu0 %2391, %v2287
      %v2393 = vpop.permute.xlu0 %2392
      %2394 = vset.pattern.permute.xlu0 0
      %2395 = vperm.xlu0 %2394, %v2288
      %v2396 = vpop.permute.xlu0 %2395
      %2397 = vset.pattern.permute.xlu0 0
      %2398 = vperm.xlu0 %2397, %v2289
      %v2399 = vpop.permute.xlu0 %2398
      %2400 = vset.pattern.permute.xlu0 0
      %2401 = vperm.xlu0 %2400, %v2290
      %v2402 = vpop.permute.xlu0 %2401
      %2403 = vset.pattern.permute.xlu0 0
      %2404 = vperm.xlu0 %2403, %v2291
      %v2405 = vpop.permute.xlu0 %2404
      %2406 = vset.pattern.permute.xlu0 0
      %2407 = vperm.xlu0 %2406, %v2292
      %v2408 = vpop.permute.xlu0 %2407
      %2409 = vset.pattern.permute.xlu0 0
      %2410 = vperm.xlu0 %2409, %v2293
      %v2411 = vpop.permute.xlu0 %2410
      %2412 = vset.pattern.permute.xlu0 0
      %2413 = vperm.xlu0 %2412, %v2294
      %v2414 = vpop.permute.xlu0 %2413
      %2415 = vset.pattern.permute.xlu0 0
      %2416 = vperm.xlu0 %2415, %v2295
      %v2417 = vpop.permute.xlu0 %2416
      %2418 = vset.pattern.permute.xlu0 0
      %2419 = vperm.xlu0 %2418, %v2296
      %v2420 = vpop.permute.xlu0 %2419
      %2421 = vset.pattern.permute.xlu0 0
      %2422 = vperm.xlu0 %2421, %v2297
      %v2423 = vpop.permute.xlu0 %2422
      %2424 = vset.pattern.permute.xlu0 0
      %2425 = vperm.xlu0 %2424, %v2298
      %v2426 = vpop.permute.xlu0 %2425
      %2427 = vset.pattern.permute.xlu0 0
      %2428 = vperm.xlu0 %2427, %v2299
      %v2429 = vpop.permute.xlu0 %2428
      %2430 = vset.pattern.permute.xlu0 0
      %2431 = vperm.xlu0 %2430, %v2300
      %v2432 = vpop.permute.xlu0 %2431
      %2433 = vset.pattern.permute.xlu0 0
      %2434 = vperm.xlu0 %2433, %v2301
      %v2435 = vpop.permute.xlu0 %2434
      %2436 = vset.pattern.permute.xlu0 0
      %2437 = vperm.xlu0 %2436, %v2302
      %v2438 = vpop.permute.xlu0 %2437
      %2439 = vset.pattern.permute.xlu0 0
      %2440 = vperm.xlu0 %2439, %v2303
      %v2441 = vpop.permute.xlu0 %2440
      %2442 = vset.pattern.permute.xlu0 0
      %2443 = vperm.xlu0 %2442, %v2304
      %v2444 = vpop.permute.xlu0 %2443
      %2445 = vset.pattern.permute.xlu0 0
      %2446 = vperm.xlu0 %2445, %v2305
      %v2447 = vpop.permute.xlu0 %2446
      %2448 = vset.pattern.permute.xlu0 0
      %2449 = vperm.xlu0 %2448, %v2306
      %v2450 = vpop.permute.xlu0 %2449
      %2451 = vset.pattern.permute.xlu0 0
      %2452 = vperm.xlu0 %2451, %v2307
      %v2453 = vpop.permute.xlu0 %2452
      %2454 = vset.pattern.permute.xlu0 0
      %2455 = vperm.xlu0 %2454, %v2308
      %v2456 = vpop.permute.xlu0 %2455
      %2457 = vset.pattern.permute.xlu0 0
      %2458 = vperm.xlu0 %2457, %v2309
      %v2459 = vpop.permute.xlu0 %2458
      %2460 = vset.pattern.permute.xlu0 0
      %2461 = vperm.xlu0 %2460, %v2310
      %v2462 = vpop.permute.xlu0 %2461
      %2463 = vset.pattern.permute.xlu0 0
      %2464 = vperm.xlu0 %2463, %v2311
      %v2465 = vpop.permute.xlu0 %2464
      %2466 = vset.pattern.permute.xlu0 0
      %2467 = vperm.xlu0 %2466, %v2312
      %v2468 = vpop.permute.xlu0 %2467
      %2469 = vset.pattern.permute.xlu0 0
      %2470 = vperm.xlu0 %2469, %v2313
      %v2471 = vpop.permute.xlu0 %2470
      %2472 = vset.pattern.permute.xlu0 0
      %2473 = vperm.xlu0 %2472, %v2314
      %v2474 = vpop.permute.xlu0 %2473
      %2475 = vset.pattern.permute.xlu0 0
      %2476 = vperm.xlu0 %2475, %v2315
      %v2477 = vpop.permute.xlu0 %2476
      %2478 = vset.pattern.permute.xlu0 0
      %2479 = vperm.xlu0 %2478, %v2316
      %v2480 = vpop.permute.xlu0 %2479
      %2481 = vset.pattern.permute.xlu0 0
      %2482 = vperm.xlu0 %2481, %v2317
      %v2483 = vpop.permute.xlu0 %2482
      %2484 = vset.pattern.permute.xlu0 0
      %2485 = vperm.xlu0 %2484, %v2318
      %v2486 = vpop.permute.xlu0 %2485
      %2487 = vset.pattern.permute.xlu0 0
      %2488 = vperm.xlu0 %2487, %v2319
      %v2489 = vpop.permute.xlu0 %2488
      %2490 = vset.pattern.permute.xlu0 0
      %2491 = vperm.xlu0 %2490, %v2320
      %v2492 = vpop.permute.xlu0 %2491
      %2493 = vset.pattern.permute.xlu0 0
      %2494 = vperm.xlu0 %2493, %v2321
      %v2495 = vpop.permute.xlu0 %2494
      %2496 = vset.pattern.permute.xlu0 0
      %2497 = vperm.xlu0 %2496, %v2322
      %v2498 = vpop.permute.xlu0 %2497
      %2499 = vset.pattern.permute.xlu0 0
      %2500 = vperm.xlu0 %2499, %v2323
      %v2501 = vpop.permute.xlu0 %2500
      %2502 = vset.pattern.permute.xlu0 0
      %2503 = vperm.xlu0 %2502, %v2324
      %v2504 = vpop.permute.xlu0 %2503
      %2505 = vset.pattern.permute.xlu0 0
      %2506 = vperm.xlu0 %2505, %v2325
      %v2507 = vpop.permute.xlu0 %2506
      %2508 = vset.pattern.permute.xlu0 0
      %2509 = vperm.xlu0 %2508, %v2326
      %v2510 = vpop.permute.xlu0 %2509
      %2511 = vset.pattern.permute.xlu0 0
      %2512 = vperm.xlu0 %2511, %v2327
      %v2513 = vpop.permute.xlu0 %2512
      %2514 = vset.pattern.permute.xlu0 0
      %2515 = vperm.xlu0 %2514, %v2328
      %v2516 = vpop.permute.xlu0 %2515
      %2517 = vset.pattern.permute.xlu0 0
      %2518 = vperm.xlu0 %2517, %v2329
      %v2519 = vpop.permute.xlu0 %2518
      %2520 = vset.pattern.permute.xlu0 0
      %2521 = vperm.xlu0 %2520, %v2330
      %v2522 = vpop.permute.xlu0 %2521
      %vm2523 = vcmp.eq.s32.totalorder %v2333, 1
      %vm2524 = vcmp.eq.s32.totalorder %v2336, 1
      %vm2525 = vcmp.eq.s32.totalorder %v2339, 1
      %vm2526 = vcmp.eq.s32.totalorder %v2342, 1
      %vm2527 = vcmp.eq.s32.totalorder %v2345, 1
      %vm2528 = vcmp.eq.s32.totalorder %v2348, 1
      %vm2529 = vcmp.eq.s32.totalorder %v2351, 1
      %vm2530 = vcmp.eq.s32.totalorder %v2354, 1
      %vm2531 = vcmp.eq.s32.totalorder %v2357, 1
      %vm2532 = vcmp.eq.s32.totalorder %v2360, 1
      %vm2533 = vcmp.eq.s32.totalorder %v2363, 1
      %vm2534 = vcmp.eq.s32.totalorder %v2366, 1
      %vm2535 = vcmp.eq.s32.totalorder %v2369, 1
      %vm2536 = vcmp.eq.s32.totalorder %v2372, 1
      %vm2537 = vcmp.eq.s32.totalorder %v2375, 1
      %vm2538 = vcmp.eq.s32.totalorder %v2378, 1
      %vm2539 = vcmp.eq.s32.totalorder %v2381, 1
      %vm2540 = vcmp.eq.s32.totalorder %v2384, 1
      %vm2541 = vcmp.eq.s32.totalorder %v2387, 1
      %vm2542 = vcmp.eq.s32.totalorder %v2390, 1
      %vm2543 = vcmp.eq.s32.totalorder %v2393, 1
      %vm2544 = vcmp.eq.s32.totalorder %v2396, 1
      %vm2545 = vcmp.eq.s32.totalorder %v2399, 1
      %vm2546 = vcmp.eq.s32.totalorder %v2402, 1
      %vm2547 = vcmp.eq.s32.totalorder %v2405, 1
      %vm2548 = vcmp.eq.s32.totalorder %v2408, 1
      %vm2549 = vcmp.eq.s32.totalorder %v2411, 1
      %vm2550 = vcmp.eq.s32.totalorder %v2414, 1
      %vm2551 = vcmp.eq.s32.totalorder %v2417, 1
      %vm2552 = vcmp.eq.s32.totalorder %v2420, 1
      %vm2553 = vcmp.eq.s32.totalorder %v2423, 1
      %vm2554 = vcmp.eq.s32.totalorder %v2426, 1
      %vm2555 = vcmp.eq.s32.totalorder %v2429, 1
      %vm2556 = vcmp.eq.s32.totalorder %v2432, 1
      %vm2557 = vcmp.eq.s32.totalorder %v2435, 1
      %vm2558 = vcmp.eq.s32.totalorder %v2438, 1
      %vm2559 = vcmp.eq.s32.totalorder %v2441, 1
      %vm2560 = vcmp.eq.s32.totalorder %v2444, 1
      %vm2561 = vcmp.eq.s32.totalorder %v2447, 1
      %vm2562 = vcmp.eq.s32.totalorder %v2450, 1
      %vm2563 = vcmp.eq.s32.totalorder %v2453, 1
      %vm2564 = vcmp.eq.s32.totalorder %v2456, 1
      %vm2565 = vcmp.eq.s32.totalorder %v2459, 1
      %vm2566 = vcmp.eq.s32.totalorder %v2462, 1
      %vm2567 = vcmp.eq.s32.totalorder %v2465, 1
      %vm2568 = vcmp.eq.s32.totalorder %v2468, 1
      %vm2569 = vcmp.eq.s32.totalorder %v2471, 1
      %vm2570 = vcmp.eq.s32.totalorder %v2474, 1
      %vm2571 = vcmp.eq.s32.totalorder %v2477, 1
      %vm2572 = vcmp.eq.s32.totalorder %v2480, 1
      %vm2573 = vcmp.eq.s32.totalorder %v2483, 1
      %vm2574 = vcmp.eq.s32.totalorder %v2486, 1
      %vm2575 = vcmp.eq.s32.totalorder %v2489, 1
      %vm2576 = vcmp.eq.s32.totalorder %v2492, 1
      %vm2577 = vcmp.eq.s32.totalorder %v2495, 1
      %vm2578 = vcmp.eq.s32.totalorder %v2498, 1
      %vm2579 = vcmp.eq.s32.totalorder %v2501, 1
      %vm2580 = vcmp.eq.s32.totalorder %v2504, 1
      %vm2581 = vcmp.eq.s32.totalorder %v2507, 1
      %vm2582 = vcmp.eq.s32.totalorder %v2510, 1
      %vm2583 = vcmp.eq.s32.totalorder %v2513, 1
      %vm2584 = vcmp.eq.s32.totalorder %v2516, 1
      %vm2585 = vcmp.eq.s32.totalorder %v2519, 1
      %vm2586 = vcmp.eq.s32.totalorder %v2522, 1
      %v2587 = vsel %vm2523, %v2011, %v2203
      %v2588 = vsel %vm2524, %v2012, %v2204
      %v2589 = vsel %vm2525, %v2013, %v2205
      %v2590 = vsel %vm2526, %v2014, %v2206
      %v2591 = vsel %vm2527, %v2015, %v2207
      %v2592 = vsel %vm2528, %v2016, %v2208
      %v2593 = vsel %vm2529, %v2017, %v2209
      %v2594 = vsel %vm2530, %v2018, %v2210
      %v2595 = vsel %vm2531, %v2019, %v2211
      %v2596 = vsel %vm2532, %v2020, %v2212
      %v2597 = vsel %vm2533, %v2021, %v2213
      %v2598 = vsel %vm2534, %v2022, %v2214
      %v2599 = vsel %vm2535, %v2023, %v2215
      %v2600 = vsel %vm2536, %v2024, %v2216
      %v2601 = vsel %vm2537, %v2025, %v2217
      %v2602 = vsel %vm2538, %v2026, %v2218
      %v2603 = vsel %vm2539, %v2027, %v2219
      %v2604 = vsel %vm2540, %v2028, %v2220
      %v2605 = vsel %vm2541, %v2029, %v2221
      %v2606 = vsel %vm2542, %v2030, %v2222
      %v2607 = vsel %vm2543, %v2031, %v2223
      %v2608 = vsel %vm2544, %v2032, %v2224
      %v2609 = vsel %vm2545, %v2033, %v2225
      %v2610 = vsel %vm2546, %v2034, %v2226
      %v2611 = vsel %vm2547, %v2035, %v2227
      %v2612 = vsel %vm2548, %v2036, %v2228
      %v2613 = vsel %vm2549, %v2037, %v2229
      %v2614 = vsel %vm2550, %v2038, %v2230
      %v2615 = vsel %vm2551, %v2039, %v2231
      %v2616 = vsel %vm2552, %v2040, %v2232
      %v2617 = vsel %vm2553, %v2041, %v2233
      %v2618 = vsel %vm2554, %v2042, %v2234
      %v2619 = vsel %vm2555, %v2043, %v2235
      %v2620 = vsel %vm2556, %v2044, %v2236
      %v2621 = vsel %vm2557, %v2045, %v2237
      %v2622 = vsel %vm2558, %v2046, %v2238
      %v2623 = vsel %vm2559, %v2047, %v2239
      %v2624 = vsel %vm2560, %v2048, %v2240
      %v2625 = vsel %vm2561, %v2049, %v2241
      %v2626 = vsel %vm2562, %v2050, %v2242
      %v2627 = vsel %vm2563, %v2051, %v2243
      %v2628 = vsel %vm2564, %v2052, %v2244
      %v2629 = vsel %vm2565, %v2053, %v2245
      %v2630 = vsel %vm2566, %v2054, %v2246
      %v2631 = vsel %vm2567, %v2055, %v2247
      %v2632 = vsel %vm2568, %v2056, %v2248
      %v2633 = vsel %vm2569, %v2057, %v2249
      %v2634 = vsel %vm2570, %v2058, %v2250
      %v2635 = vsel %vm2571, %v2059, %v2251
      %v2636 = vsel %vm2572, %v2060, %v2252
      %v2637 = vsel %vm2573, %v2061, %v2253
      %v2638 = vsel %vm2574, %v2062, %v2254
      %v2639 = vsel %vm2575, %v2063, %v2255
      %v2640 = vsel %vm2576, %v2064, %v2256
      %v2641 = vsel %vm2577, %v2065, %v2257
      %v2642 = vsel %vm2578, %v2066, %v2258
      %v2643 = vsel %vm2579, %v2067, %v2259
      %v2644 = vsel %vm2580, %v2068, %v2260
      %v2645 = vsel %vm2581, %v2069, %v2261
      %v2646 = vsel %vm2582, %v2070, %v2262
      %v2647 = vsel %vm2583, %v2071, %v2263
      %v2648 = vsel %vm2584, %v2072, %v2264
      %v2649 = vsel %vm2585, %v2073, %v2265
      %v2650 = vsel %vm2586, %v2074, %v2266
      %2651 = vst [vmem:[#allocation10] sm:$0xff] %v2587
      %2652 = vst [vmem:[#allocation10 + $0x8] sm:$0xff] %v2588
      %2653 = vst [vmem:[#allocation10 + $0x10] sm:$0xff] %v2589
      %2654 = vst [vmem:[#allocation10 + $0x18] sm:$0xff] %v2590
      %2655 = vst [vmem:[#allocation10 + $0x20] sm:$0xff] %v2591
      %2656 = vst [vmem:[#allocation10 + $0x28] sm:$0xff] %v2592
      %2657 = vst [vmem:[#allocation10 + $0x30] sm:$0xff] %v2593
      %2658 = vst [vmem:[#allocation10 + $0x38] sm:$0xff] %v2594
      %2659 = vst [vmem:[#allocation10 + $0x40] sm:$0xff] %v2595
      %2660 = vst [vmem:[#allocation10 + $0x48] sm:$0xff] %v2596
      %2661 = vst [vmem:[#allocation10 + $0x50] sm:$0xff] %v2597
      %2662 = vst [vmem:[#allocation10 + $0x58] sm:$0xff] %v2598
      %2663 = vst [vmem:[#allocation10 + $0x60] sm:$0xff] %v2599
      %2664 = vst [vmem:[#allocation10 + $0x68] sm:$0xff] %v2600
      %2665 = vst [vmem:[#allocation10 + $0x70] sm:$0xff] %v2601
      %2666 = vst [vmem:[#allocation10 + $0x78] sm:$0xff] %v2602
      %2667 = vst [vmem:[#allocation10 + $0x80] sm:$0xff] %v2603
      %2668 = vst [vmem:[#allocation10 + $0x88] sm:$0xff] %v2604
      %2669 = vst [vmem:[#allocation10 + $0x90] sm:$0xff] %v2605
      %2670 = vst [vmem:[#allocation10 + $0x98] sm:$0xff] %v2606
      %2671 = vst [vmem:[#allocation10 + $0xa0] sm:$0xff] %v2607
      %2672 = vst [vmem:[#allocation10 + $0xa8] sm:$0xff] %v2608
      %2673 = vst [vmem:[#allocation10 + $0xb0] sm:$0xff] %v2609
      %2674 = vst [vmem:[#allocation10 + $0xb8] sm:$0xff] %v2610
      %2675 = vst [vmem:[#allocation10 + $0xc0] sm:$0xff] %v2611
      %2676 = vst [vmem:[#allocation10 + $0xc8] sm:$0xff] %v2612
      %2677 = vst [vmem:[#allocation10 + $0xd0] sm:$0xff] %v2613
      %2678 = vst [vmem:[#allocation10 + $0xd8] sm:$0xff] %v2614
      %2679 = vst [vmem:[#allocation10 + $0xe0] sm:$0xff] %v2615
      %2680 = vst [vmem:[#allocation10 + $0xe8] sm:$0xff] %v2616
      %2681 = vst [vmem:[#allocation10 + $0xf0] sm:$0xff] %v2617
      %2682 = vst [vmem:[#allocation10 + $0xf8] sm:$0xff] %v2618
      %2683 = vst [vmem:[#allocation10 + $0x100] sm:$0xff] %v2619
      %2684 = vst [vmem:[#allocation10 + $0x108] sm:$0xff] %v2620
      %2685 = vst [vmem:[#allocation10 + $0x110] sm:$0xff] %v2621
      %2686 = vst [vmem:[#allocation10 + $0x118] sm:$0xff] %v2622
      %2687 = vst [vmem:[#allocation10 + $0x120] sm:$0xff] %v2623
      %2688 = vst [vmem:[#allocation10 + $0x128] sm:$0xff] %v2624
      %2689 = vst [vmem:[#allocation10 + $0x130] sm:$0xff] %v2625
      %2690 = vst [vmem:[#allocation10 + $0x138] sm:$0xff] %v2626
      %2691 = vst [vmem:[#allocation10 + $0x140] sm:$0xff] %v2627
      %2692 = vst [vmem:[#allocation10 + $0x148] sm:$0xff] %v2628
      %2693 = vst [vmem:[#allocation10 + $0x150] sm:$0xff] %v2629
      %2694 = vst [vmem:[#allocation10 + $0x158] sm:$0xff] %v2630
      %2695 = vst [vmem:[#allocation10 + $0x160] sm:$0xff] %v2631
      %2696 = vst [vmem:[#allocation10 + $0x168] sm:$0xff] %v2632
      %2697 = vst [vmem:[#allocation10 + $0x170] sm:$0xff] %v2633
      %2698 = vst [vmem:[#allocation10 + $0x178] sm:$0xff] %v2634
      %2699 = vst [vmem:[#allocation10 + $0x180] sm:$0xff] %v2635
      %2700 = vst [vmem:[#allocation10 + $0x188] sm:$0xff] %v2636
      %2701 = vst [vmem:[#allocation10 + $0x190] sm:$0xff] %v2637
      %2702 = vst [vmem:[#allocation10 + $0x198] sm:$0xff] %v2638
      %2703 = vst [vmem:[#allocation10 + $0x1a0] sm:$0xff] %v2639
      %2704 = vst [vmem:[#allocation10 + $0x1a8] sm:$0xff] %v2640
      %2705 = vst [vmem:[#allocation10 + $0x1b0] sm:$0xff] %v2641
      %2706 = vst [vmem:[#allocation10 + $0x1b8] sm:$0xff] %v2642
      %2707 = vst [vmem:[#allocation10 + $0x1c0] sm:$0xff] %v2643
      %2708 = vst [vmem:[#allocation10 + $0x1c8] sm:$0xff] %v2644
      %2709 = vst [vmem:[#allocation10 + $0x1d0] sm:$0xff] %v2645
      %2710 = vst [vmem:[#allocation10 + $0x1d8] sm:$0xff] %v2646
      %2711 = vst [vmem:[#allocation10 + $0x1e0] sm:$0xff] %v2647
      %2712 = vst [vmem:[#allocation10 + $0x1e8] sm:$0xff] %v2648
      %2713 = vst [vmem:[#allocation10 + $0x1f0] sm:$0xff] %v2649
      %2714 = vst [vmem:[#allocation10 + $0x1f8] sm:$0xff] %v2650
    $region41: #{tpu_custom_call.1} parent=1 // pred_fallthru
      _
    // Predicated region
    $region42: #{tpu_custom_call.1} parent=1 // pred_check
      _
    $region43: #{tpu_custom_call.1} parent=1 // pred_check_branch
      %2716 = sbr.rel (0) target = $region45
    $region44: #{tpu_custom_call.1} parent=1 // pred_region
      %s2718 = ssub.s32 8192, 8192
      %2719 = vsyncadd [#allocation7], %s2718
      %s2720 = sshll.u32 [#allocation10], 4
      %s2721 = int_to_ptr.vmem [resolvable:$true] %s2720
      %2726 = dma.vmem_to_hbm [thread:$0]  %s2721, 8192, %s7, [#allocation7], 128, 128, 8
    $region45: #{tpu_custom_call.1} parent=1 // pred_fallthru
      _
    // Predicated region
    $region46: #{tpu_custom_call.1} parent=1 // pred_check
      _
    $region47: #{tpu_custom_call.1} parent=1 // pred_check_branch
      %2728 = sbr.rel (0) target = $region49
    $region48: #{tpu_custom_call.1} parent=1 // pred_region
      %2729 = dma.done [#allocation7], 8192
    $region49: #{tpu_custom_call.1} parent=1 // pred_fallthru
      _
    %2730 = vsyncpa [#allocation6], 1
    %2731 = vsyncpa [#allocation9], 1
    %2732 = vsyncpa [#allocation7], 1

</llo_original>
